<compile_context>
chip_gen: v7x
topology: tpu7x:2x2x1
jax: 0.10.0
libtpu: 0.0.40
codegen_flags: <defaults>
</compile_context>

<pallas_src>
import functools
import math

import jax
import jax.numpy as jnp
from jax.experimental import pallas as pl
from jax.experimental.pallas import tpu as pltpu


# ---------------------------------------------------------------------------
# stencil bookkeeping
# ---------------------------------------------------------------------------

def _tap_positions():
    """17 unique (dh, dw) offsets of conv1 (1x7) + conv2 (7x1) + conv3 (3x3)."""
    pos = {(0, dw) for dw in range(-3, 4)}
    pos |= {(dh, 0) for dh in range(-3, 4)}
    pos |= {(dh, dw) for dh in range(-1, 2) for dw in range(-1, 2)}
    return sorted(pos)


def _round_up(x, m):
    return (x + m - 1) // m * m


def _physical_vmem_bytes():
    """Generation-aware physical VMEM per core; conservative fallback (v7x: 64 MiB)."""
    try:
        return int(pltpu.get_tpu_info().vmem_capacity_bytes)
    except Exception:
        return 64 << 20


def _choose_row_tile(H, Wp, Ceff, itemsize, tile_budget, row_tile=None):
    """Largest row-tile height whose double-buffered band + output scratch fit the
    budget.  No divisor constraint (ragged last tile allowed); row counts are kept
    such that band byte-offsets stay 32B-aligned."""
    ceff_pad = _round_up(Ceff, 8)
    req = 8 // math.gcd(Wp, 8)          # TH*Wp multiple of 8 elems -> 32B aligned DMA

    def footprint(th):
        lpad = _round_up(th * Wp, 128)
        lb = _round_up(lpad + 6 * Wp + 6, 128)
        return 2 * ceff_pad * (lb + lpad) * itemsize

    if row_tile is not None:            # explicit override (tests / tuning)
        return _round_up(max(1, min(row_tile, H)), req)

    th = _round_up(min(H, 128), req)
    while th > req and footprint(th) > tile_budget:
        th -= req
    return max(req, th)


# ---------------------------------------------------------------------------
# kernel
# ---------------------------------------------------------------------------

def _mfam_kernel(x_hbm, wm_ref, w4_ref, b_ref, o_hbm,
                 in_buf, out_buf, in_sem, out_sem, *,
                 nT, TH, Wp, Lpad, Lb, tap_off, center, Ceff, use_mxu, chunk):
    n = pl.program_id(0)
    band_stride = TH * Wp
    off_c = tap_off[center]

    def in_copy(t, slot):
        # haloed, flattened row band of the padded image (starts at padded row t*TH)
        return pltpu.make_async_copy(
            x_hbm.at[n, :, pl.ds(t * band_stride, Lb)],
            in_buf.at[slot], in_sem.at[slot])

    def out_copy(t, slot):
        return pltpu.make_async_copy(
            out_buf.at[slot], o_hbm.at[n, :, t, :], out_sem.at[slot])

    # Tiny operand tiles: loaded once, reused by every row tile / lane chunk.
    wm = wm_ref[...]        # (Ceff, 17)  merged depthwise taps (+ residual)
    w4m = w4_ref[...]       # (Ceff, Ceff) 1x1 conv (block-diagonal when packed)
    b = b_ref[...]          # (Ceff, 1)   folded biases

    in_copy(0, 0).start()   # prime the first band

    @pl.loop(0, nT)
    def _(t):
        slot = t % 2

        @pl.when(t + 1 < nT)            # prefetch the next band into the other slot
        def _():
            in_copy(t + 1, 1 - slot).start()

        in_copy(t, slot).wait()

        @pl.when(t >= 2)                # output slot is reused every other tile
        def _():
            out_copy(t, slot).wait()    # same size/semaphore -> valid wait handle

        # Merged 17-tap depthwise stencil + folded bias/residual + 1x1 conv,
        # streamed in lane chunks to bound vreg pressure (no full-band register
        # materialisation; every tap is a lane-offset slice of the VMEM band ref).
        for q in range(0, Lpad, chunk):
            cw = min(chunk, Lpad - q)
            xc = in_buf[slot, :, pl.ds(q + off_c, cw)]          # centre window
            acc = b + wm[:, center:center + 1] * xc
            for i, off in enumerate(tap_off):
                if i == center:
                    continue
                acc = acc + wm[:, i:i + 1] * in_buf[slot, :, pl.ds(q + off, cw)]
            if use_mxu:
                acc = acc + jnp.dot(w4m, xc, preferred_element_type=jnp.float32)
            else:
                for ci in range(Ceff):                          # VPU broadcast-MACs
                    acc = acc + w4m[:, ci:ci + 1] * xc[ci:ci + 1, :]
            out_buf[slot, :, pl.ds(q, cw)] = acc.astype(out_buf.dtype)

        out_copy(t, slot).start()

    # Drain the (at most two) outstanding output DMAs.
    if nT >= 2:
        out_copy(nT - 2, (nT - 2) % 2).wait()
    out_copy(nT - 1, (nT - 1) % 2).wait()


# ---------------------------------------------------------------------------
# wrapper
# ---------------------------------------------------------------------------

def mfam_pallas(x_nchw, params, *, row_tile=None):
    """x_nchw: (N, C, H, W). Returns (N, C, H, W), matching MFAM.forward."""
    w1, b1, w2, b2, w3, b3, w4, b4 = params
    N, C, H, W = x_nchw.shape
    dtype = x_nchw.dtype
    itemsize = jnp.dtype(dtype).itemsize

    # ---- pack whole batch images onto the 8-wide f32 sublane axis when C < 8 ----
    GN = 1
    if C < 8:
        GN = max(1, 8 // C)
        while GN > 1 and N % GN != 0:
            GN -= 1
    Npk, Ceff = N // GN, GN * C

    Wp = W + 6
    phys_vmem = _physical_vmem_bytes()
    TH = _choose_row_tile(H, Wp, Ceff, itemsize, phys_vmem // 4, row_tile)
    nT = -(-H // TH)                        # ragged last tile allowed
    L = TH * Wp                             # valid flattened length of one row tile
    Lpad = _round_up(L, 128)                # lane-dense (unmasked) store length
    Lb = _round_up(Lpad + 6 * Wp + 6, 128)  # haloed band length incl. guard

    taps = _tap_positions()
    T = len(taps)
    center = taps.index((0, 0))
    # out(r, c) of tile t reads band[(3 + r + dh)*Wp + (3 + c + dw)]; band starts at
    # padded row t*TH, so the tap offset inside the band is:
    tap_off = tuple((3 + dh) * Wp + (3 + dw) for dh, dw in taps)

    # ---- merge the three depthwise kernels + residual; fold all four biases ----
    cols = []
    for dh, dw in taps:
        wc = jnp.zeros((C,), jnp.float32)
        if dh == 0:
            wc = wc + w1[:, 0, 0, dw + 3]               # conv1 (1, 7), pad (0, 3)
        if dw == 0:
            wc = wc + w2[:, 0, dh + 3, 0]               # conv2 (7, 1), pad (3, 0)
        if abs(dh) <= 1 and abs(dw) <= 1:
            wc = wc + w3[:, 0, dh + 1, dw + 1]          # conv3 (3, 3), pad (1, 1)
        if dh == 0 and dw == 0:
            wc = wc + 1.0                               # residual "+ x"
        cols.append(wc)
    wm = jnp.stack(cols, axis=1)                        # (C, 17): a single lane tile
    bias = (b1 + b2 + b3 + b4).astype(jnp.float32).reshape(C, 1)
    w4m = w4.reshape(C, C).astype(jnp.float32)
    if GN > 1:
        wm = jnp.tile(wm, (GN, 1))
        bias = jnp.tile(bias, (GN, 1))
        w4m = jnp.kron(jnp.eye(GN, dtype=w4m.dtype), w4m)   # block-diag mixing

    # ---- pad once (3 rows/cols each side + guard rows), flatten spatial ----------
    need_flat = (nT - 1) * TH * Wp + Lb
    Hp = max(H + 7, -(-need_flat // Wp))
    xp = jnp.pad(x_nchw, ((0, 0), (0, 0), (3, Hp - H - 3), (3, 3)))
    xflat = xp.reshape(Npk, Ceff, Hp * Wp)               # pure reshape, no copy

    use_mxu = Ceff >= 64     # small C: VPU broadcast-MACs beat a nearly idle MXU
    chunk = max(128, min(512, (8192 // _round_up(Ceff, 8)) // 128 * 128))

    kernel = functools.partial(
        _mfam_kernel, nT=nT, TH=TH, Wp=Wp, Lpad=Lpad, Lb=Lb,
        tap_off=tap_off, center=center, Ceff=Ceff, use_mxu=use_mxu, chunk=chunk)

    out = pl.pallas_call(
        kernel,
        out_shape=jax.ShapeDtypeStruct((Npk, Ceff, nT, Lpad), dtype),
        grid=(Npk,),
        in_specs=[
            pl.BlockSpec(memory_space=pl.ANY),               # padded image in HBM
            pl.BlockSpec((Ceff, T), lambda n: (0, 0)),       # merged taps
            pl.BlockSpec((Ceff, Ceff), lambda n: (0, 0)),    # 1x1 conv
            pl.BlockSpec((Ceff, 1), lambda n: (0, 0)),       # folded bias
        ],
        out_specs=pl.BlockSpec(memory_space=pl.ANY),         # written via DMA
        scratch_shapes=[
            pltpu.VMEM((2, Ceff, Lb), dtype),                # double-buffered band
            pltpu.VMEM((2, Ceff, Lpad), dtype),              # double-buffered out
            pltpu.SemaphoreType.DMA((2,)),
            pltpu.SemaphoreType.DMA((2,)),
        ],
        compiler_params=pltpu.CompilerParams(
            dimension_semantics=("parallel",),
            # generation-aware limit with headroom: <=32 MiB on v7x (64 MiB cores),
            # <=64 MiB on v5e/v6e (128 MiB cores).
            vmem_limit_bytes=int(min(96 << 20, max(32 << 20, phys_vmem // 2))),
        ),
    )(xflat, wm, w4m, bias)

    # (Npk, Ceff, nT, Lpad) -> (N, C, H, W): free reshapes + one strip slice,
    # no transpose (channels stay ahead of the row tiles).
    out = out[..., :L].reshape(Npk, GN, C, nT * TH, Wp)[:, :, :, :H, :W]
    return out.reshape(N, C, H, W)


# ---------------------------------------------------------------------------
# pure-JAX reference + synthetic params
# ---------------------------------------------------------------------------

def mfam_reference(x, params):
    w1, b1, w2, b2, w3, b3, w4, b4 = params
    C = x.shape[1]
    dn = ('NCHW', 'OIHW', 'NCHW')

    def conv(x_, w, b, pad, groups):
        y = jax.lax.conv_general_dilated(
            x_, w, window_strides=(1, 1), padding=pad,
            dimension_numbers=dn, feature_group_count=groups)
        return y + b.reshape(1, -1, 1, 1)

    y1 = conv(x, w1, b1, [(0, 0), (3, 3)], C)
    y2 = conv(x, w2, b2, [(3, 3), (0, 0)], C)
    y3 = conv(x, w3, b3, [(1, 1), (1, 1)], C)
    y4 = conv(x, w4, b4, [(0, 0), (0, 0)], 1)
    return y1 + y2 + y3 + y4 + x


def init_params(key, C):
    ks = jax.random.split(key, 8)
    s = 0.1
    w1 = s * jax.random.normal(ks[0], (C, 1, 1, 7), jnp.float32)
    b1 = s * jax.random.normal(ks[1], (C,), jnp.float32)
    w2 = s * jax.random.normal(ks[2], (C, 1, 7, 1), jnp.float32)
    b2 = s * jax.random.normal(ks[3], (C,), jnp.float32)
    w3 = s * jax.random.normal(ks[4], (C, 1, 3, 3), jnp.float32)
    b3 = s * jax.random.normal(ks[5], (C,), jnp.float32)
    w4 = s * jax.random.normal(ks[6], (C, C, 1, 1), jnp.float32)
    b4 = s * jax.random.normal(ks[7], (C,), jnp.float32)
    return (w1, b1, w2, b2, w3, b3, w4, b4)


if __name__ == "__main__":
    # in_channels == out_channels is required by the residual "+ x" in forward.
    N, C, H, W = 2, 4, 16, 16
    key = jax.random.PRNGKey(0)
    kx, kp = jax.random.split(key)
    x = jax.random.normal(kx, (N, C, H, W), jnp.float32)
    params = init_params(kp, C)
    ref = mfam_reference(x, params)

    # Default tiling (whole image per tile here).
    out = jax.block_until_ready(jax.jit(mfam_pallas)(x, params))
    assert out.shape == ref.shape == (N, C, H, W)
    assert jnp.allclose(out, ref, atol=1e-4, rtol=1e-4), "mismatch (default tiling)"

    # Forced small tiles: exercises the double-buffered DMA pipeline (prefetch,
    # slot-reuse waits, drain) and the ragged last row tile.
    out4 = jax.block_until_ready(
        jax.jit(lambda a, p: mfam_pallas(a, p, row_tile=4))(x, params))
    assert jnp.allclose(out4, ref, atol=1e-4, rtol=1e-4), "mismatch (row_tile=4)"

    out12 = jax.block_until_ready(
        jax.jit(lambda a, p: mfam_pallas(a, p, row_tile=12))(x, params))
    assert jnp.allclose(out12, ref, atol=1e-4, rtol=1e-4), "mismatch (ragged tile)"

    print("KERNEL_OK")
</pallas_src>

<mosaic_0001>
module attributes {stable_mosaic.version = 11 : i64} {
  func.func @_mfam_kernel(%arg0: i32, %arg1: memref<1x8x660xf32, #tpu.memory_space<any>>, %arg2: memref<8x17xf32, #tpu.memory_space<vmem>>, %arg3: memref<8x8xf32, #tpu.memory_space<vmem>>, %arg4: memref<8x1xf32, #tpu.memory_space<vmem>>, %arg5: memref<1x8x1x384xf32, #tpu.memory_space<any>>, %arg6: memref<2x8x640xf32, #tpu.memory_space<vmem>>, %arg7: memref<2x8x384xf32, #tpu.memory_space<vmem>>, %arg8: memref<2x!tpu.dma_semaphore, #tpu.memory_space<semaphore_mem>>, %arg9: memref<2x!tpu.dma_semaphore, #tpu.memory_space<semaphore_mem>>) attributes {dimension_semantics = [#tpu.dimension_semantics<parallel>], iteration_bounds = array<i64: 1>, scalar_prefetch = 0 : i64, scratch_operands = 4 : i64, tpu.core_type = #tpu.core_type<tc>, window_params = [{}, {pipeline_mode = #tpu.pipeline_mode<synchronous>, transform_indices = @transform_1, window_bounds = array<i64: 8, 17>}, {pipeline_mode = #tpu.pipeline_mode<synchronous>, transform_indices = @transform_2, window_bounds = array<i64: 8, 8>}, {pipeline_mode = #tpu.pipeline_mode<synchronous>, transform_indices = @transform_3, window_bounds = array<i64: 8, 1>}, {}]} {
    %c0 = arith.constant 0 : index
    %c0_0 = arith.constant 0 : index
    %0 = vector.load %arg2[%c0, %c0_0] : memref<8x17xf32, #tpu.memory_space<vmem>>, vector<8x17xf32>
    %c0_1 = arith.constant 0 : index
    %c0_2 = arith.constant 0 : index
    %1 = vector.load %arg3[%c0_1, %c0_2] : memref<8x8xf32, #tpu.memory_space<vmem>>, vector<8x8xf32>
    %c0_3 = arith.constant 0 : index
    %c0_4 = arith.constant 0 : index
    %2 = vector.load %arg4[%c0_3, %c0_4] : memref<8x1xf32, #tpu.memory_space<vmem>>, vector<8x1xf32>
    %c0_i32 = arith.constant 0 : i32
    %c0_i32_5 = arith.constant 0 : i32
    %c0_i32_6 = arith.constant 0 : i32
    %c0_i32_7 = arith.constant 0 : i32
    %3 = tpu.memref_slice %arg1[%arg0, %c0_i32_6, %c0_i32_7] : memref<1x8x660xf32, #tpu.memory_space<any>> -> memref<1x8x640xf32, #tpu.memory_space<any>>
    %4 = tpu.memref_squeeze %3 : memref<1x8x640xf32, #tpu.memory_space<any>> -> memref<8x640xf32, #tpu.memory_space<any>>
    %c0_i32_8 = arith.constant 0 : i32
    %c0_i32_9 = arith.constant 0 : i32
    %5 = tpu.memref_slice %arg6[%c0_i32, %c0_i32_8, %c0_i32_9] : memref<2x8x640xf32, #tpu.memory_space<vmem>> -> memref<1x8x640xf32, #tpu.memory_space<vmem>>
    %6 = tpu.memref_squeeze %5 : memref<1x8x640xf32, #tpu.memory_space<vmem>> -> memref<8x640xf32, #tpu.memory_space<vmem>>
    %7 = tpu.memref_slice %arg8[%c0_i32_5] : memref<2x!tpu.dma_semaphore, #tpu.memory_space<semaphore_mem>> -> memref<1x!tpu.dma_semaphore, #tpu.memory_space<semaphore_mem>>
    %8 = tpu.memref_squeeze %7 : memref<1x!tpu.dma_semaphore, #tpu.memory_space<semaphore_mem>> -> memref<!tpu.dma_semaphore, #tpu.memory_space<semaphore_mem>>
    tpu.enqueue_dma source(%4 : memref<8x640xf32, #tpu.memory_space<any>>) target(%6 : memref<8x640xf32, #tpu.memory_space<vmem>>) target_semaphore(%8 : memref<!tpu.dma_semaphore, #tpu.memory_space<semaphore_mem>>)
    %c0_i32_10 = arith.constant 0 : i32
    %c1_i32 = arith.constant 1 : i32
    %9 = arith.muli %c0_i32_10, %c1_i32 : i32
    %c0_i32_11 = arith.constant 0 : i32
    %10 = arith.addi %c0_i32_11, %9 : i32
    %c2_i32 = arith.constant 2 : i32
    %c0_i32_12 = arith.constant 0 : i32
    %11 = arith.cmpi eq, %c2_i32, %c0_i32_12 : i32
    %c1_i32_13 = arith.constant 1 : i32
    %12 = arith.select %11, %c1_i32_13, %c2_i32 : i32
    %13 = arith.remsi %10, %12 : i32
    %c0_i32_14 = arith.constant 0 : i32
    %14 = arith.cmpi ne, %13, %c0_i32_14 : i32
    %c0_i32_15 = arith.constant 0 : i32
    %15 = arith.cmpi slt, %13, %c0_i32_15 : i32
    %c0_i32_16 = arith.constant 0 : i32
    %16 = arith.cmpi slt, %12, %c0_i32_16 : i32
    %17 = arith.xori %15, %16 : i1
    %18 = arith.andi %17, %14 : i1
    %19 = arith.addi %13, %12 : i32
    %20 = arith.select %18, %19, %13 : i32
    %c1_i32_17 = arith.constant 1 : i32
    %21 = arith.addi %10, %c1_i32_17 : i32
    %c1_i32_18 = arith.constant 1 : i32
    %22 = arith.cmpi slt, %21, %c1_i32_18 : i32
    %23 = arith.extui %22 : i1 to i32
    %c0_i32_19 = arith.constant 0 : i32
    %24 = arith.cmpi ne, %23, %c0_i32_19 : i32
    scf.if %24 {
      %c1_i32_56 = arith.constant 1 : i32
      %219 = arith.addi %10, %c1_i32_56 : i32
      %c1_i32_57 = arith.constant 1 : i32
      %220 = arith.subi %c1_i32_57, %20 : i32
      %c352_i32_58 = arith.constant 352 : i32
      %221 = arith.muli %219, %c352_i32_58 : i32
      %c0_i32_59 = arith.constant 0 : i32
      %222 = tpu.memref_slice %arg1[%arg0, %c0_i32_59, %221] : memref<1x8x660xf32, #tpu.memory_space<any>> -> memref<1x8x640xf32, #tpu.memory_space<any>>
      %223 = tpu.memref_squeeze %222 : memref<1x8x640xf32, #tpu.memory_space<any>> -> memref<8x640xf32, #tpu.memory_space<any>>
      %c0_i32_60 = arith.constant 0 : i32
      %c0_i32_61 = arith.constant 0 : i32
      %224 = tpu.memref_slice %arg6[%220, %c0_i32_60, %c0_i32_61] : memref<2x8x640xf32, #tpu.memory_space<vmem>> -> memref<1x8x640xf32, #tpu.memory_space<vmem>>
      %225 = tpu.memref_squeeze %224 : memref<1x8x640xf32, #tpu.memory_space<vmem>> -> memref<8x640xf32, #tpu.memory_space<vmem>>
      %226 = tpu.memref_slice %arg8[%220] : memref<2x!tpu.dma_semaphore, #tpu.memory_space<semaphore_mem>> -> memref<1x!tpu.dma_semaphore, #tpu.memory_space<semaphore_mem>>
      %227 = tpu.memref_squeeze %226 : memref<1x!tpu.dma_semaphore, #tpu.memory_space<semaphore_mem>> -> memref<!tpu.dma_semaphore, #tpu.memory_space<semaphore_mem>>
      tpu.enqueue_dma source(%223 : memref<8x640xf32, #tpu.memory_space<any>>) target(%225 : memref<8x640xf32, #tpu.memory_space<vmem>>) target_semaphore(%227 : memref<!tpu.dma_semaphore, #tpu.memory_space<semaphore_mem>>)
    } else {
    }
    %c352_i32 = arith.constant 352 : i32
    %25 = arith.muli %10, %c352_i32 : i32
    %c0_i32_20 = arith.constant 0 : i32
    %26 = tpu.memref_slice %arg1[%arg0, %c0_i32_20, %25] : memref<1x8x660xf32, #tpu.memory_space<any>> -> memref<1x8x640xf32, #tpu.memory_space<any>>
    %27 = tpu.memref_squeeze %26 : memref<1x8x640xf32, #tpu.memory_space<any>> -> memref<8x640xf32, #tpu.memory_space<any>>
    %c0_i32_21 = arith.constant 0 : i32
    %c0_i32_22 = arith.constant 0 : i32
    %28 = tpu.memref_slice %arg6[%20, %c0_i32_21, %c0_i32_22] : memref<2x8x640xf32, #tpu.memory_space<vmem>> -> memref<1x8x640xf32, #tpu.memory_space<vmem>>
    %29 = tpu.memref_squeeze %28 : memref<1x8x640xf32, #tpu.memory_space<vmem>> -> memref<8x640xf32, #tpu.memory_space<vmem>>
    %30 = tpu.memref_slice %arg8[%20] : memref<2x!tpu.dma_semaphore, #tpu.memory_space<semaphore_mem>> -> memref<1x!tpu.dma_semaphore, #tpu.memory_space<semaphore_mem>>
    %31 = tpu.memref_squeeze %30 : memref<1x!tpu.dma_semaphore, #tpu.memory_space<semaphore_mem>> -> memref<!tpu.dma_semaphore, #tpu.memory_space<semaphore_mem>>
    tpu.wait_dma2 semaphore(%31 : memref<!tpu.dma_semaphore, #tpu.memory_space<semaphore_mem>>) src(%27 : memref<8x640xf32, #tpu.memory_space<any>>) dst(%29 : memref<8x640xf32, #tpu.memory_space<vmem>>)
    %c2_i32_23 = arith.constant 2 : i32
    %32 = arith.cmpi sge, %10, %c2_i32_23 : i32
    %33 = arith.extui %32 : i1 to i32
    %c0_i32_24 = arith.constant 0 : i32
    %34 = arith.cmpi ne, %33, %c0_i32_24 : i32
    scf.if %34 {
      %c0_i32_56 = arith.constant 0 : i32
      %c0_i32_57 = arith.constant 0 : i32
      %219 = tpu.memref_slice %arg7[%20, %c0_i32_56, %c0_i32_57] : memref<2x8x384xf32, #tpu.memory_space<vmem>> -> memref<1x8x384xf32, #tpu.memory_space<vmem>>
      %220 = tpu.memref_squeeze %219 : memref<1x8x384xf32, #tpu.memory_space<vmem>> -> memref<8x384xf32, #tpu.memory_space<vmem>>
      %c0_i32_58 = arith.constant 0 : i32
      %c0_i32_59 = arith.constant 0 : i32
      %221 = tpu.memref_slice %arg5[%arg0, %c0_i32_58, %10, %c0_i32_59] : memref<1x8x1x384xf32, #tpu.memory_space<any>> -> memref<1x8x1x384xf32, #tpu.memory_space<any>>
      %222 = tpu.memref_squeeze %221 : memref<1x8x1x384xf32, #tpu.memory_space<any>> -> memref<8x384xf32, #tpu.memory_space<any>>
      %223 = tpu.memref_slice %arg9[%20] : memref<2x!tpu.dma_semaphore, #tpu.memory_space<semaphore_mem>> -> memref<1x!tpu.dma_semaphore, #tpu.memory_space<semaphore_mem>>
      %224 = tpu.memref_squeeze %223 : memref<1x!tpu.dma_semaphore, #tpu.memory_space<semaphore_mem>> -> memref<!tpu.dma_semaphore, #tpu.memory_space<semaphore_mem>>
      tpu.wait_dma2 semaphore(%224 : memref<!tpu.dma_semaphore, #tpu.memory_space<semaphore_mem>>) src(%220 : memref<8x384xf32, #tpu.memory_space<vmem>>) dst(%222 : memref<8x384xf32, #tpu.memory_space<any>>)
    } else {
    }
    %35 = arith.index_cast %20 : i32 to index
    %c0_25 = arith.constant 0 : index
    %c69 = arith.constant 69 : index
    %36 = vector.load %arg6[%35, %c0_25, %c69] : memref<2x8x640xf32, #tpu.memory_space<vmem>>, vector<1x8x384xf32>
    %37 = vector.shape_cast %36 : vector<1x8x384xf32> to vector<8x384xf32>
    %38 = vector.extract_strided_slice %0 {offsets = [0, 8], sizes = [8, 1], strides = [1, 1]} : vector<8x17xf32> to vector<8x1xf32>
    %39 = vector.broadcast %38 : vector<8x1xf32> to vector<8x384xf32>
    %40 = arith.mulf %39, %37 : vector<8x384xf32>
    %41 = vector.broadcast %2 : vector<8x1xf32> to vector<8x384xf32>
    %42 = arith.addf %41, %40 : vector<8x384xf32>
    %43 = vector.extract_strided_slice %0 {offsets = [0, 0], sizes = [8, 1], strides = [1, 1]} : vector<8x17xf32> to vector<8x1xf32>
    %44 = arith.index_cast %20 : i32 to index
    %c0_26 = arith.constant 0 : index
    %c3 = arith.constant 3 : index
    %45 = vector.load %arg6[%44, %c0_26, %c3] : memref<2x8x640xf32, #tpu.memory_space<vmem>>, vector<1x8x384xf32>
    %46 = vector.shape_cast %45 : vector<1x8x384xf32> to vector<8x384xf32>
    %47 = vector.broadcast %43 : vector<8x1xf32> to vector<8x384xf32>
    %48 = arith.mulf %47, %46 : vector<8x384xf32>
    %49 = arith.addf %42, %48 : vector<8x384xf32>
    %50 = vector.extract_strided_slice %0 {offsets = [0, 1], sizes = [8, 1], strides = [1, 1]} : vector<8x17xf32> to vector<8x1xf32>
    %51 = arith.index_cast %20 : i32 to index
    %c0_27 = arith.constant 0 : index
    %c25 = arith.constant 25 : index
    %52 = vector.load %arg6[%51, %c0_27, %c25] : memref<2x8x640xf32, #tpu.memory_space<vmem>>, vector<1x8x384xf32>
    %53 = vector.shape_cast %52 : vector<1x8x384xf32> to vector<8x384xf32>
    %54 = vector.broadcast %50 : vector<8x1xf32> to vector<8x384xf32>
    %55 = arith.mulf %54, %53 : vector<8x384xf32>
    %56 = arith.addf %49, %55 : vector<8x384xf32>
    %57 = vector.extract_strided_slice %0 {offsets = [0, 2], sizes = [8, 1], strides = [1, 1]} : vector<8x17xf32> to vector<8x1xf32>
    %58 = arith.index_cast %20 : i32 to index
    %c0_28 = arith.constant 0 : index
    %c46 = arith.constant 46 : index
    %59 = vector.load %arg6[%58, %c0_28, %c46] : memref<2x8x640xf32, #tpu.memory_space<vmem>>, vector<1x8x384xf32>
    %60 = vector.shape_cast %59 : vector<1x8x384xf32> to vector<8x384xf32>
    %61 = vector.broadcast %57 : vector<8x1xf32> to vector<8x384xf32>
    %62 = arith.mulf %61, %60 : vector<8x384xf32>
    %63 = arith.addf %56, %62 : vector<8x384xf32>
    %64 = vector.extract_strided_slice %0 {offsets = [0, 3], sizes = [8, 1], strides = [1, 1]} : vector<8x17xf32> to vector<8x1xf32>
    %65 = arith.index_cast %20 : i32 to index
    %c0_29 = arith.constant 0 : index
    %c47 = arith.constant 47 : index
    %66 = vector.load %arg6[%65, %c0_29, %c47] : memref<2x8x640xf32, #tpu.memory_space<vmem>>, vector<1x8x384xf32>
    %67 = vector.shape_cast %66 : vector<1x8x384xf32> to vector<8x384xf32>
    %68 = vector.broadcast %64 : vector<8x1xf32> to vector<8x384xf32>
    %69 = arith.mulf %68, %67 : vector<8x384xf32>
    %70 = arith.addf %63, %69 : vector<8x384xf32>
    %71 = vector.extract_strided_slice %0 {offsets = [0, 4], sizes = [8, 1], strides = [1, 1]} : vector<8x17xf32> to vector<8x1xf32>
    %72 = arith.index_cast %20 : i32 to index
    %c0_30 = arith.constant 0 : index
    %c48 = arith.constant 48 : index
    %73 = vector.load %arg6[%72, %c0_30, %c48] : memref<2x8x640xf32, #tpu.memory_space<vmem>>, vector<1x8x384xf32>
    %74 = vector.shape_cast %73 : vector<1x8x384xf32> to vector<8x384xf32>
    %75 = vector.broadcast %71 : vector<8x1xf32> to vector<8x384xf32>
    %76 = arith.mulf %75, %74 : vector<8x384xf32>
    %77 = arith.addf %70, %76 : vector<8x384xf32>
    %78 = vector.extract_strided_slice %0 {offsets = [0, 5], sizes = [8, 1], strides = [1, 1]} : vector<8x17xf32> to vector<8x1xf32>
    %79 = arith.index_cast %20 : i32 to index
    %c0_31 = arith.constant 0 : index
    %c66 = arith.constant 66 : index
    %80 = vector.load %arg6[%79, %c0_31, %c66] : memref<2x8x640xf32, #tpu.memory_space<vmem>>, vector<1x8x384xf32>
    %81 = vector.shape_cast %80 : vector<1x8x384xf32> to vector<8x384xf32>
    %82 = vector.broadcast %78 : vector<8x1xf32> to vector<8x384xf32>
    %83 = arith.mulf %82, %81 : vector<8x384xf32>
    %84 = arith.addf %77, %83 : vector<8x384xf32>
    %85 = vector.extract_strided_slice %0 {offsets = [0, 6], sizes = [8, 1], strides = [1, 1]} : vector<8x17xf32> to vector<8x1xf32>
    %86 = arith.index_cast %20 : i32 to index
    %c0_32 = arith.constant 0 : index
    %c67 = arith.constant 67 : index
    %87 = vector.load %arg6[%86, %c0_32, %c67] : memref<2x8x640xf32, #tpu.memory_space<vmem>>, vector<1x8x384xf32>
    %88 = vector.shape_cast %87 : vector<1x8x384xf32> to vector<8x384xf32>
    %89 = vector.broadcast %85 : vector<8x1xf32> to vector<8x384xf32>
    %90 = arith.mulf %89, %88 : vector<8x384xf32>
    %91 = arith.addf %84, %90 : vector<8x384xf32>
    %92 = vector.extract_strided_slice %0 {offsets = [0, 7], sizes = [8, 1], strides = [1, 1]} : vector<8x17xf32> to vector<8x1xf32>
    %93 = arith.index_cast %20 : i32 to index
    %c0_33 = arith.constant 0 : index
    %c68 = arith.constant 68 : index
    %94 = vector.load %arg6[%93, %c0_33, %c68] : memref<2x8x640xf32, #tpu.memory_space<vmem>>, vector<1x8x384xf32>
    %95 = vector.shape_cast %94 : vector<1x8x384xf32> to vector<8x384xf32>
    %96 = vector.broadcast %92 : vector<8x1xf32> to vector<8x384xf32>
    %97 = arith.mulf %96, %95 : vector<8x384xf32>
    %98 = arith.addf %91, %97 : vector<8x384xf32>
    %99 = vector.extract_strided_slice %0 {offsets = [0, 9], sizes = [8, 1], strides = [1, 1]} : vector<8x17xf32> to vector<8x1xf32>
    %100 = arith.index_cast %20 : i32 to index
    %c0_34 = arith.constant 0 : index
    %c70 = arith.constant 70 : index
    %101 = vector.load %arg6[%100, %c0_34, %c70] : memref<2x8x640xf32, #tpu.memory_space<vmem>>, vector<1x8x384xf32>
    %102 = vector.shape_cast %101 : vector<1x8x384xf32> to vector<8x384xf32>
    %103 = vector.broadcast %99 : vector<8x1xf32> to vector<8x384xf32>
    %104 = arith.mulf %103, %102 : vector<8x384xf32>
    %105 = arith.addf %98, %104 : vector<8x384xf32>
    %106 = vector.extract_strided_slice %0 {offsets = [0, 10], sizes = [8, 1], strides = [1, 1]} : vector<8x17xf32> to vector<8x1xf32>
    %107 = arith.index_cast %20 : i32 to index
    %c0_35 = arith.constant 0 : index
    %c71 = arith.constant 71 : index
    %108 = vector.load %arg6[%107, %c0_35, %c71] : memref<2x8x640xf32, #tpu.memory_space<vmem>>, vector<1x8x384xf32>
    %109 = vector.shape_cast %108 : vector<1x8x384xf32> to vector<8x384xf32>
    %110 = vector.broadcast %106 : vector<8x1xf32> to vector<8x384xf32>
    %111 = arith.mulf %110, %109 : vector<8x384xf32>
    %112 = arith.addf %105, %111 : vector<8x384xf32>
    %113 = vector.extract_strided_slice %0 {offsets = [0, 11], sizes = [8, 1], strides = [1, 1]} : vector<8x17xf32> to vector<8x1xf32>
    %114 = arith.index_cast %20 : i32 to index
    %c0_36 = arith.constant 0 : index
    %c72 = arith.constant 72 : index
    %115 = vector.load %arg6[%114, %c0_36, %c72] : memref<2x8x640xf32, #tpu.memory_space<vmem>>, vector<1x8x384xf32>
    %116 = vector.shape_cast %115 : vector<1x8x384xf32> to vector<8x384xf32>
    %117 = vector.broadcast %113 : vector<8x1xf32> to vector<8x384xf32>
    %118 = arith.mulf %117, %116 : vector<8x384xf32>
    %119 = arith.addf %112, %118 : vector<8x384xf32>
    %120 = vector.extract_strided_slice %0 {offsets = [0, 12], sizes = [8, 1], strides = [1, 1]} : vector<8x17xf32> to vector<8x1xf32>
    %121 = arith.index_cast %20 : i32 to index
    %c0_37 = arith.constant 0 : index
    %c90 = arith.constant 90 : index
    %122 = vector.load %arg6[%121, %c0_37, %c90] : memref<2x8x640xf32, #tpu.memory_space<vmem>>, vector<1x8x384xf32>
    %123 = vector.shape_cast %122 : vector<1x8x384xf32> to vector<8x384xf32>
    %124 = vector.broadcast %120 : vector<8x1xf32> to vector<8x384xf32>
    %125 = arith.mulf %124, %123 : vector<8x384xf32>
    %126 = arith.addf %119, %125 : vector<8x384xf32>
    %127 = vector.extract_strided_slice %0 {offsets = [0, 13], sizes = [8, 1], strides = [1, 1]} : vector<8x17xf32> to vector<8x1xf32>
    %128 = arith.index_cast %20 : i32 to index
    %c0_38 = arith.constant 0 : index
    %c91 = arith.constant 91 : index
    %129 = vector.load %arg6[%128, %c0_38, %c91] : memref<2x8x640xf32, #tpu.memory_space<vmem>>, vector<1x8x384xf32>
    %130 = vector.shape_cast %129 : vector<1x8x384xf32> to vector<8x384xf32>
    %131 = vector.broadcast %127 : vector<8x1xf32> to vector<8x384xf32>
    %132 = arith.mulf %131, %130 : vector<8x384xf32>
    %133 = arith.addf %126, %132 : vector<8x384xf32>
    %134 = vector.extract_strided_slice %0 {offsets = [0, 14], sizes = [8, 1], strides = [1, 1]} : vector<8x17xf32> to vector<8x1xf32>
    %135 = arith.index_cast %20 : i32 to index
    %c0_39 = arith.constant 0 : index
    %c92 = arith.constant 92 : index
    %136 = vector.load %arg6[%135, %c0_39, %c92] : memref<2x8x640xf32, #tpu.memory_space<vmem>>, vector<1x8x384xf32>
    %137 = vector.shape_cast %136 : vector<1x8x384xf32> to vector<8x384xf32>
    %138 = vector.broadcast %134 : vector<8x1xf32> to vector<8x384xf32>
    %139 = arith.mulf %138, %137 : vector<8x384xf32>
    %140 = arith.addf %133, %139 : vector<8x384xf32>
    %141 = vector.extract_strided_slice %0 {offsets = [0, 15], sizes = [8, 1], strides = [1, 1]} : vector<8x17xf32> to vector<8x1xf32>
    %142 = arith.index_cast %20 : i32 to index
    %c0_40 = arith.constant 0 : index
    %c113 = arith.constant 113 : index
    %143 = vector.load %arg6[%142, %c0_40, %c113] : memref<2x8x640xf32, #tpu.memory_space<vmem>>, vector<1x8x384xf32>
    %144 = vector.shape_cast %143 : vector<1x8x384xf32> to vector<8x384xf32>
    %145 = vector.broadcast %141 : vector<8x1xf32> to vector<8x384xf32>
    %146 = arith.mulf %145, %144 : vector<8x384xf32>
    %147 = arith.addf %140, %146 : vector<8x384xf32>
    %148 = vector.extract_strided_slice %0 {offsets = [0, 16], sizes = [8, 1], strides = [1, 1]} : vector<8x17xf32> to vector<8x1xf32>
    %149 = arith.index_cast %20 : i32 to index
    %c0_41 = arith.constant 0 : index
    %c135 = arith.constant 135 : index
    %150 = vector.load %arg6[%149, %c0_41, %c135] : memref<2x8x640xf32, #tpu.memory_space<vmem>>, vector<1x8x384xf32>
    %151 = vector.shape_cast %150 : vector<1x8x384xf32> to vector<8x384xf32>
    %152 = vector.broadcast %148 : vector<8x1xf32> to vector<8x384xf32>
    %153 = arith.mulf %152, %151 : vector<8x384xf32>
    %154 = arith.addf %147, %153 : vector<8x384xf32>
    %155 = vector.extract_strided_slice %1 {offsets = [0, 0], sizes = [8, 1], strides = [1, 1]} : vector<8x8xf32> to vector<8x1xf32>
    %156 = vector.extract_strided_slice %37 {offsets = [0, 0], sizes = [1, 384], strides = [1, 1]} : vector<8x384xf32> to vector<1x384xf32>
    %157 = vector.broadcast %155 : vector<8x1xf32> to vector<8x384xf32>
    %158 = vector.broadcast %156 : vector<1x384xf32> to vector<8x384xf32>
    %159 = arith.mulf %157, %158 : vector<8x384xf32>
    %160 = arith.addf %154, %159 : vector<8x384xf32>
    %161 = vector.extract_strided_slice %1 {offsets = [0, 1], sizes = [8, 1], strides = [1, 1]} : vector<8x8xf32> to vector<8x1xf32>
    %162 = vector.extract_strided_slice %37 {offsets = [1, 0], sizes = [1, 384], strides = [1, 1]} : vector<8x384xf32> to vector<1x384xf32>
    %163 = vector.broadcast %161 : vector<8x1xf32> to vector<8x384xf32>
    %164 = vector.broadcast %162 : vector<1x384xf32> to vector<8x384xf32>
    %165 = arith.mulf %163, %164 : vector<8x384xf32>
    %166 = arith.addf %160, %165 : vector<8x384xf32>
    %167 = vector.extract_strided_slice %1 {offsets = [0, 2], sizes = [8, 1], strides = [1, 1]} : vector<8x8xf32> to vector<8x1xf32>
    %168 = vector.extract_strided_slice %37 {offsets = [2, 0], sizes = [1, 384], strides = [1, 1]} : vector<8x384xf32> to vector<1x384xf32>
    %169 = vector.broadcast %167 : vector<8x1xf32> to vector<8x384xf32>
    %170 = vector.broadcast %168 : vector<1x384xf32> to vector<8x384xf32>
    %171 = arith.mulf %169, %170 : vector<8x384xf32>
    %172 = arith.addf %166, %171 : vector<8x384xf32>
    %173 = vector.extract_strided_slice %1 {offsets = [0, 3], sizes = [8, 1], strides = [1, 1]} : vector<8x8xf32> to vector<8x1xf32>
    %174 = vector.extract_strided_slice %37 {offsets = [3, 0], sizes = [1, 384], strides = [1, 1]} : vector<8x384xf32> to vector<1x384xf32>
    %175 = vector.broadcast %173 : vector<8x1xf32> to vector<8x384xf32>
    %176 = vector.broadcast %174 : vector<1x384xf32> to vector<8x384xf32>
    %177 = arith.mulf %175, %176 : vector<8x384xf32>
    %178 = arith.addf %172, %177 : vector<8x384xf32>
    %179 = vector.extract_strided_slice %1 {offsets = [0, 4], sizes = [8, 1], strides = [1, 1]} : vector<8x8xf32> to vector<8x1xf32>
    %180 = vector.extract_strided_slice %37 {offsets = [4, 0], sizes = [1, 384], strides = [1, 1]} : vector<8x384xf32> to vector<1x384xf32>
    %181 = vector.broadcast %179 : vector<8x1xf32> to vector<8x384xf32>
    %182 = vector.broadcast %180 : vector<1x384xf32> to vector<8x384xf32>
    %183 = arith.mulf %181, %182 : vector<8x384xf32>
    %184 = arith.addf %178, %183 : vector<8x384xf32>
    %185 = vector.extract_strided_slice %1 {offsets = [0, 5], sizes = [8, 1], strides = [1, 1]} : vector<8x8xf32> to vector<8x1xf32>
    %186 = vector.extract_strided_slice %37 {offsets = [5, 0], sizes = [1, 384], strides = [1, 1]} : vector<8x384xf32> to vector<1x384xf32>
    %187 = vector.broadcast %185 : vector<8x1xf32> to vector<8x384xf32>
    %188 = vector.broadcast %186 : vector<1x384xf32> to vector<8x384xf32>
    %189 = arith.mulf %187, %188 : vector<8x384xf32>
    %190 = arith.addf %184, %189 : vector<8x384xf32>
    %191 = vector.extract_strided_slice %1 {offsets = [0, 6], sizes = [8, 1], strides = [1, 1]} : vector<8x8xf32> to vector<8x1xf32>
    %192 = vector.extract_strided_slice %37 {offsets = [6, 0], sizes = [1, 384], strides = [1, 1]} : vector<8x384xf32> to vector<1x384xf32>
    %193 = vector.broadcast %191 : vector<8x1xf32> to vector<8x384xf32>
    %194 = vector.broadcast %192 : vector<1x384xf32> to vector<8x384xf32>
    %195 = arith.mulf %193, %194 : vector<8x384xf32>
    %196 = arith.addf %190, %195 : vector<8x384xf32>
    %197 = vector.extract_strided_slice %1 {offsets = [0, 7], sizes = [8, 1], strides = [1, 1]} : vector<8x8xf32> to vector<8x1xf32>
    %198 = vector.extract_strided_slice %37 {offsets = [7, 0], sizes = [1, 384], strides = [1, 1]} : vector<8x384xf32> to vector<1x384xf32>
    %199 = vector.broadcast %197 : vector<8x1xf32> to vector<8x384xf32>
    %200 = vector.broadcast %198 : vector<1x384xf32> to vector<8x384xf32>
    %201 = arith.mulf %199, %200 : vector<8x384xf32>
    %202 = arith.addf %196, %201 : vector<8x384xf32>
    %203 = arith.index_cast %20 : i32 to index
    %c0_42 = arith.constant 0 : index
    %c0_43 = arith.constant 0 : index
    %204 = vector.load %arg7[%203, %c0_42, %c0_43] : memref<2x8x384xf32, #tpu.memory_space<vmem>>, vector<1x8x384xf32>
    %205 = vector.shape_cast %204 : vector<1x8x384xf32> to vector<8x384xf32>
    %206 = vector.shape_cast %202 : vector<8x384xf32> to vector<1x8x384xf32>
    tpu.vector_store %arg7[%203, %c0_42, %c0_43], %206 {strides = array<i32>} : memref<2x8x384xf32, #tpu.memory_space<vmem>>, vector<1x8x384xf32>,
    %c0_i32_44 = arith.constant 0 : i32
    %c0_i32_45 = arith.constant 0 : i32
    %207 = tpu.memref_slice %arg7[%20, %c0_i32_44, %c0_i32_45] : memref<2x8x384xf32, #tpu.memory_space<vmem>> -> memref<1x8x384xf32, #tpu.memory_space<vmem>>
    %208 = tpu.memref_squeeze %207 : memref<1x8x384xf32, #tpu.memory_space<vmem>> -> memref<8x384xf32, #tpu.memory_space<vmem>>
    %c0_i32_46 = arith.constant 0 : i32
    %c0_i32_47 = arith.constant 0 : i32
    %209 = tpu.memref_slice %arg5[%arg0, %c0_i32_46, %10, %c0_i32_47] : memref<1x8x1x384xf32, #tpu.memory_space<any>> -> memref<1x8x1x384xf32, #tpu.memory_space<any>>
    %210 = tpu.memref_squeeze %209 : memref<1x8x1x384xf32, #tpu.memory_space<any>> -> memref<8x384xf32, #tpu.memory_space<any>>
    %211 = tpu.memref_slice %arg9[%20] : memref<2x!tpu.dma_semaphore, #tpu.memory_space<semaphore_mem>> -> memref<1x!tpu.dma_semaphore, #tpu.memory_space<semaphore_mem>>
    %212 = tpu.memref_squeeze %211 : memref<1x!tpu.dma_semaphore, #tpu.memory_space<semaphore_mem>> -> memref<!tpu.dma_semaphore, #tpu.memory_space<semaphore_mem>>
    tpu.enqueue_dma source(%208 : memref<8x384xf32, #tpu.memory_space<vmem>>) target(%210 : memref<8x384xf32, #tpu.memory_space<any>>) target_semaphore(%212 : memref<!tpu.dma_semaphore, #tpu.memory_space<semaphore_mem>>)
    %c1_i32_48 = arith.constant 1 : i32
    %c0_i32_49 = arith.constant 0 : i32
    %c0_i32_50 = arith.constant 0 : i32
    %c0_i32_51 = arith.constant 0 : i32
    %c0_i32_52 = arith.constant 0 : i32
    %c0_i32_53 = arith.constant 0 : i32
    %213 = tpu.memref_slice %arg7[%c0_i32_49, %c0_i32_52, %c0_i32_53] : memref<2x8x384xf32, #tpu.memory_space<vmem>> -> memref<1x8x384xf32, #tpu.memory_space<vmem>>
    %214 = tpu.memref_squeeze %213 : memref<1x8x384xf32, #tpu.memory_space<vmem>> -> memref<8x384xf32, #tpu.memory_space<vmem>>
    %c0_i32_54 = arith.constant 0 : i32
    %c0_i32_55 = arith.constant 0 : i32
    %215 = tpu.memref_slice %arg5[%arg0, %c0_i32_54, %c0_i32_50, %c0_i32_55] : memref<1x8x1x384xf32, #tpu.memory_space<any>> -> memref<1x8x1x384xf32, #tpu.memory_space<any>>
    %216 = tpu.memref_squeeze %215 : memref<1x8x1x384xf32, #tpu.memory_space<any>> -> memref<8x384xf32, #tpu.memory_space<any>>
    %217 = tpu.memref_slice %arg9[%c0_i32_51] : memref<2x!tpu.dma_semaphore, #tpu.memory_space<semaphore_mem>> -> memref<1x!tpu.dma_semaphore, #tpu.memory_space<semaphore_mem>>
    %218 = tpu.memref_squeeze %217 : memref<1x!tpu.dma_semaphore, #tpu.memory_space<semaphore_mem>> -> memref<!tpu.dma_semaphore, #tpu.memory_space<semaphore_mem>>
    tpu.wait_dma2 semaphore(%218 : memref<!tpu.dma_semaphore, #tpu.memory_space<semaphore_mem>>) src(%214 : memref<8x384xf32, #tpu.memory_space<vmem>>) dst(%216 : memref<8x384xf32, #tpu.memory_space<any>>)
    return
  }
  func.func @transform_1(%arg0: i32) -> (i32, i32) {
    %c0_i32 = arith.constant 0 : i32
    %c0_i32_0 = arith.constant 0 : i32
    %c0_i32_1 = arith.constant 0 : i32
    return %c0_i32, %c0_i32_0 : i32, i32
  }
  func.func @transform_2(%arg0: i32) -> (i32, i32) {
    %c0_i32 = arith.constant 0 : i32
    %c0_i32_0 = arith.constant 0 : i32
    %c0_i32_1 = arith.constant 0 : i32
    return %c0_i32, %c0_i32_0 : i32, i32
  }
  func.func @transform_3(%arg0: i32) -> (i32, i32) {
    %c0_i32 = arith.constant 0 : i32
    %c0_i32_0 = arith.constant 0 : i32
    %c0_i32_1 = arith.constant 0 : i32
    return %c0_i32, %c0_i32_0 : i32, i32
  }
}

</mosaic_0001>

<llo_original>
// kernel: mfam_pallas.1
$region0: #{mfam_pallas.1}
  #allocation0 [shape = 'u32[]', space=smem, size = 0x4, offset = 0x4, fixed_abs, tag = 'smem constant byte address 0x4 - core index']
  #allocation1 [shape = 'u32[144,128]{1,0:T(1,128)}', space=vmem, size = 0x12000, scoped, tag = 'internal scratch']
  #allocation2 [shape = 'f32[2,8,640]{2,1,0:T(8,128)}', space=vmem, size = 0xa000, scoped, tag = 'scratch operand']
  #allocation3 [shape = 'f32[2,8,384]{2,1,0:T(8,128)}', space=vmem, size = 0x6000, scoped, tag = 'scratch operand']
  #allocation4 [shape = 's32[2]{0}', space=sflag, size = 0x8, scoped, tag = 'scratch operand']
  #allocation5 [shape = 's32[2]{0}', space=sflag, size = 0x8, scoped, tag = 'scratch operand']
  #allocation6 [shape = 's32[]', space=sflag, size = 0x4, offset = 0, fixed_abs, tag = 'sflag constant byte address 0x0 - dummy sync flag']
  #allocation7 [shape = 's32[]', space=sflag, size = 0x4, offset = 0, fixed_abs, tag = 'sflag constant byte address 0x0 - dummy sync flag']
  %s0 = inlined_call_operand.vmem [shape: f32[1,8,660], index: 0, kind: input, shape index: {}]
  %s1 = inlined_call_operand.vmem [shape: f32[8,17], index: 1, kind: input, shape index: {}]
  %s2 = inlined_call_operand.vmem [shape: f32[8,8], index: 2, kind: input, shape index: {}]
  %s3 = inlined_call_operand.vmem [shape: f32[8,1], index: 3, kind: input, shape index: {}]
  %s4 = inlined_call_operand.vmem [shape: f32[1,8,1,384], index: 4, kind: output, shape index: {}]
  %s5 = sld [smem:[#allocation0]]
  $region85: #{mfam_pallas.1} parent=0
    _
  %s7 = ssub.s32 1, %s5
  %s8 = scalar_select 0, %s7, %s5
  // Predicated region
  $region2: #{mfam_pallas.1} parent=0 // pred_check
    _
  $region3: #{mfam_pallas.1} parent=0 // pred_check_branch
    %10 = sbr.rel (0) target = $region5
  $region4: #{mfam_pallas.1} parent=0 // pred_region
    _
  $region5: #{mfam_pallas.1} parent=0 // pred_fallthru
    _
  // Predicated region
  $region6: #{mfam_pallas.1} parent=0 // pred_check
    _
  $region7: #{mfam_pallas.1} parent=0 // pred_check_branch
    %12 = sbr.rel (0) target = $region9
  $region8: #{mfam_pallas.1} parent=0 // pred_region
    _
  $region9: #{mfam_pallas.1} parent=0 // pred_fallthru
    _
  // Predicated region
  $region10: #{mfam_pallas.1} parent=0 // pred_check
    _
  $region11: #{mfam_pallas.1} parent=0 // pred_check_branch
    %14 = sbr.rel (0) target = $region13
  $region12: #{mfam_pallas.1} parent=0 // pred_region
    _
  $region13: #{mfam_pallas.1} parent=0 // pred_fallthru
    _
  %v15 = vld [vmem:[%s1] sm:$0xff]
  %v16 = vld [vmem:[%s2] sm:$0xff]
  %v17 = vld [vmem:[%s3] sm:$0xff]
  %s18 = smul.u32 0, 6
  %s19 = smul.addr %s18, 8
  %s20 = scalar_lea.vmem %s0, %s19
  %p22 = scmp.lt.u32.totalorder 40, 8
  %p23 = pneg %p22
  // Predicated region
  $region14: #{mfam_pallas.1} parent=0 // pred_check
    _
  $region15: #{mfam_pallas.1} parent=0 // pred_check_branch
    %25 = sbr.rel (%p22) target = $region17
  $region16: #{mfam_pallas.1} parent=0 // pred_region
    %s40 = sand.u32 40, 7
    %p41 = scmp.eq.s32.totalorder %s40, 0
    // Predicated region
    $region29: #{mfam_pallas.1} parent=16 // pred_check
      %p42 = pneg %p41
    $region30: #{mfam_pallas.1} parent=16 // pred_check_branch
      %44 = sbr.rel (%p42) target = $region32
    $region31: #{mfam_pallas.1} parent=16 // pred_region
      loop: start=0, step=1, limit=1
      $region33: #{mfam_pallas.1} parent=31 // loop_pre_header
        _
      $region34: #{mfam_pallas.1} parent=31 // loop_header
        %s46 = sphi 0, %s50
        %p47 = scmp.ge.s32.totalorder %s46, 1
        %s51 = sphi %s20, %s20
        %s52 = sphi [#allocation2], [#allocation2]
      $region35: #{mfam_pallas.1} parent=31 // loop_header_branch
        %49 = sbr.rel (%p47) target = $region39
      $region36: #{mfam_pallas.1} parent=31 // loop_body
        %v53 = vld [vmem:[%s51] sm:$0xff]
        %54 = vst [vmem:[%s52] sm:$0xff] %v53
        %v55 = vld [vmem:[%s51 + $0x8] sm:$0xff]
        %56 = vst [vmem:[%s52 + $0x8] sm:$0xff] %v55
        %v57 = vld [vmem:[%s51 + $0x10] sm:$0xff]
        %58 = vst [vmem:[%s52 + $0x10] sm:$0xff] %v57
        %v59 = vld [vmem:[%s51 + $0x18] sm:$0xff]
        %60 = vst [vmem:[%s52 + $0x18] sm:$0xff] %v59
        %v61 = vld [vmem:[%s51 + $0x20] sm:$0xff]
        %62 = vst [vmem:[%s52 + $0x20] sm:$0xff] %v61
      $region37: #{mfam_pallas.1} parent=31 // loop_footer
        %s50 = sadd.s32 1, %s46
      $region38: #{mfam_pallas.1} parent=31 // loop_footer_branch
        %45 = sbr.rel target = $region34
      $region39: #{mfam_pallas.1} parent=31 // loop_exit
        _
    $region32: #{mfam_pallas.1} parent=16 // pred_fallthru
      _
    %p63 = pneg %p41
    // Predicated region
    $region40: #{mfam_pallas.1} parent=16 // pred_check
      _
    $region41: #{mfam_pallas.1} parent=16 // pred_check_branch
      %65 = sbr.rel (%p41) target = $region43
    $region42: #{mfam_pallas.1} parent=16 // pred_region
      %s66 = sand.u32 40, 7
    $region43: #{mfam_pallas.1} parent=16 // pred_fallthru
      _
  $region17: #{mfam_pallas.1} parent=0 // pred_fallthru
    _
  // Predicated region
  $region18: #{mfam_pallas.1} parent=0 // pred_check
    %p26 = pneg %p22
  $region19: #{mfam_pallas.1} parent=0 // pred_check_branch
    %28 = sbr.rel (%p26) target = $region21
  $region20: #{mfam_pallas.1} parent=0 // pred_region
    %s29 = sshllo.u32 0, 40
    loop: start=0, step=1, limit=1
    $region22: #{mfam_pallas.1} parent=20 // loop_pre_header
      _
    $region23: #{mfam_pallas.1} parent=20 // loop_header
      %s31 = sphi 0, %s35
      %p32 = scmp.ge.s32.totalorder %s31, 1
      %s36 = sphi %s20, %s20
      %s37 = sphi [#allocation2], [#allocation2]
    $region24: #{mfam_pallas.1} parent=20 // loop_header_branch
      %34 = sbr.rel (%p32) target = $region28
    $region25: #{mfam_pallas.1} parent=20 // loop_body
      %v38 = vld [vmem:[%s36] sm:%s29]
      %39 = vst [vmem:[%s37] sm:%s29] %v38
    $region26: #{mfam_pallas.1} parent=20 // loop_footer
      %s35 = sadd.s32 1, %s31
    $region27: #{mfam_pallas.1} parent=20 // loop_footer_branch
      %30 = sbr.rel target = $region23
    $region28: #{mfam_pallas.1} parent=20 // loop_exit
      _
  $region21: #{mfam_pallas.1} parent=0 // pred_fallthru
    _
  // Predicated region
  $region44: #{mfam_pallas.1} parent=0 // pred_check
    _
  $region45: #{mfam_pallas.1} parent=0 // pred_check_branch
    %69 = sbr.rel (0) target = $region47
  $region46: #{mfam_pallas.1} parent=0 // pred_region
    %70 = vsyncadd [#allocation4], 640
  $region47: #{mfam_pallas.1} parent=0 // pred_fallthru
    _
  %s71 = smul.u32 8, 1
  %s72 = smul.u32 %s71, 5
  %s73 = sshll.u32 %s72, 4
  %74 = dma.done [#allocation4], %s73
  %v75 = vld [vmem:[#allocation2] sm:$0xff]
  %v76 = vld [vmem:[#allocation2 + $0x8] sm:$0xff]
  %v77 = vld [vmem:[#allocation2 + $0x10] sm:$0xff]
  %v78 = vld [vmem:[#allocation2 + $0x18] sm:$0xff]
  %80 = vset.pattern.permute.xlu0 8
  %81 = vperm.xlu0 %80, %v15
  %v82 = vpop.permute.xlu0 %81
  %v84 = vmul.f32 %v82, %v75
  %v85 = vmul.f32 %v82, %v76
  %v86 = vmul.f32 %v82, %v77
  %v87 = vmul.f32 %v82, %v78
  %89 = vset.pattern.permute.xlu0 0
  %90 = vperm.xlu0 %89, %v17
  %v91 = vpop.permute.xlu0 %90
  %v93 = vadd.f32 %v91, %v84
  %v94 = vadd.f32 %v91, %v85
  %v95 = vadd.f32 %v91, %v86
  %v96 = vadd.f32 %v91, %v87
  %97 = vset.pattern.permute.xlu0 0
  %98 = vperm.xlu0 %97, %v15
  %v99 = vpop.permute.xlu0 %98
  %v101 = vmul.f32 %v99, %v75
  %v102 = vmul.f32 %v99, %v76
  %v103 = vmul.f32 %v99, %v77
  %v104 = vmul.f32 %v99, %v78
  %109 = vrot.lane.b32.xlu0 %v101, 66
  %v110 = vpop.permute.xlu0 %109
  %111 = vrot.lane.b32.xlu0 %v102, 66
  %v112 = vpop.permute.xlu0 %111
  %113 = vrot.lane.b32.xlu0 %v103, 66
  %v114 = vpop.permute.xlu0 %113
  %115 = vrot.lane.b32.xlu0 %v104, 66
  %v116 = vpop.permute.xlu0 %115
  %vm117 = vcmask 539648
  %v118 = vsel %vm117, %v110, %v112
  %v119 = vsel %vm117, %v112, %v114
  %v120 = vsel %vm117, %v114, %v116
  %v125 = vadd.f32 %v93, %v110
  %v126 = vadd.f32 %v94, %v118
  %v127 = vadd.f32 %v95, %v119
  %v128 = vadd.f32 %v96, %v120
  %129 = vset.pattern.permute.xlu0 1
  %130 = vperm.xlu0 %129, %v15
  %v131 = vpop.permute.xlu0 %130
  %v133 = vmul.f32 %v131, %v75
  %v134 = vmul.f32 %v131, %v76
  %v135 = vmul.f32 %v131, %v77
  %v136 = vmul.f32 %v131, %v78
  %141 = vrot.lane.b32.xlu0 %v133, 44
  %v142 = vpop.permute.xlu0 %141
  %143 = vrot.lane.b32.xlu0 %v134, 44
  %v144 = vpop.permute.xlu0 %143
  %145 = vrot.lane.b32.xlu0 %v135, 44
  %v146 = vpop.permute.xlu0 %145
  %147 = vrot.lane.b32.xlu0 %v136, 44
  %v148 = vpop.permute.xlu0 %147
  %vm149 = vcmask 359424
  %v150 = vsel %vm149, %v142, %v144
  %v151 = vsel %vm149, %v144, %v146
  %v152 = vsel %vm149, %v146, %v148
  %v157 = vadd.f32 %v125, %v142
  %v158 = vadd.f32 %v126, %v150
  %v159 = vadd.f32 %v127, %v151
  %v160 = vadd.f32 %v128, %v152
  %161 = vset.pattern.permute.xlu0 2
  %162 = vperm.xlu0 %161, %v15
  %v163 = vpop.permute.xlu0 %162
  %v165 = vmul.f32 %v163, %v75
  %v166 = vmul.f32 %v163, %v76
  %v167 = vmul.f32 %v163, %v77
  %v168 = vmul.f32 %v163, %v78
  %173 = vrot.lane.b32.xlu0 %v165, 23
  %v174 = vpop.permute.xlu0 %173
  %175 = vrot.lane.b32.xlu0 %v166, 23
  %v176 = vpop.permute.xlu0 %175
  %177 = vrot.lane.b32.xlu0 %v167, 23
  %v178 = vpop.permute.xlu0 %177
  %179 = vrot.lane.b32.xlu0 %v168, 23
  %v180 = vpop.permute.xlu0 %179
  %vm181 = vcmask 187392
  %v182 = vsel %vm181, %v174, %v176
  %v183 = vsel %vm181, %v176, %v178
  %v184 = vsel %vm181, %v178, %v180
  %v189 = vadd.f32 %v157, %v174
  %v190 = vadd.f32 %v158, %v182
  %v191 = vadd.f32 %v159, %v183
  %v192 = vadd.f32 %v160, %v184
  %193 = vset.pattern.permute.xlu0 3
  %194 = vperm.xlu0 %193, %v15
  %v195 = vpop.permute.xlu0 %194
  %v197 = vmul.f32 %v195, %v75
  %v198 = vmul.f32 %v195, %v76
  %v199 = vmul.f32 %v195, %v77
  %v200 = vmul.f32 %v195, %v78
  %205 = vrot.lane.b32.xlu0 %v197, 22
  %v206 = vpop.permute.xlu0 %205
  %207 = vrot.lane.b32.xlu0 %v198, 22
  %v208 = vpop.permute.xlu0 %207
  %209 = vrot.lane.b32.xlu0 %v199, 22
  %v210 = vpop.permute.xlu0 %209
  %211 = vrot.lane.b32.xlu0 %v200, 22
  %v212 = vpop.permute.xlu0 %211
  %vm213 = vcmask 179200
  %v214 = vsel %vm213, %v206, %v208
  %v215 = vsel %vm213, %v208, %v210
  %v216 = vsel %vm213, %v210, %v212
  %v221 = vadd.f32 %v189, %v206
  %v222 = vadd.f32 %v190, %v214
  %v223 = vadd.f32 %v191, %v215
  %v224 = vadd.f32 %v192, %v216
  %225 = vset.pattern.permute.xlu0 4
  %226 = vperm.xlu0 %225, %v15
  %v227 = vpop.permute.xlu0 %226
  %v229 = vmul.f32 %v227, %v75
  %v230 = vmul.f32 %v227, %v76
  %v231 = vmul.f32 %v227, %v77
  %v232 = vmul.f32 %v227, %v78
  %237 = vrot.lane.b32.xlu0 %v229, 21
  %v238 = vpop.permute.xlu0 %237
  %239 = vrot.lane.b32.xlu0 %v230, 21
  %v240 = vpop.permute.xlu0 %239
  %241 = vrot.lane.b32.xlu0 %v231, 21
  %v242 = vpop.permute.xlu0 %241
  %243 = vrot.lane.b32.xlu0 %v232, 21
  %v244 = vpop.permute.xlu0 %243
  %vm245 = vcmask 171008
  %v246 = vsel %vm245, %v238, %v240
  %v247 = vsel %vm245, %v240, %v242
  %v248 = vsel %vm245, %v242, %v244
  %v253 = vadd.f32 %v221, %v238
  %v254 = vadd.f32 %v222, %v246
  %v255 = vadd.f32 %v223, %v247
  %v256 = vadd.f32 %v224, %v248
  %257 = vset.pattern.permute.xlu0 5
  %258 = vperm.xlu0 %257, %v15
  %v259 = vpop.permute.xlu0 %258
  %v261 = vmul.f32 %v259, %v75
  %v262 = vmul.f32 %v259, %v76
  %v263 = vmul.f32 %v259, %v77
  %v264 = vmul.f32 %v259, %v78
  %269 = vrot.lane.b32.xlu0 %v261, 3
  %v270 = vpop.permute.xlu0 %269
  %271 = vrot.lane.b32.xlu0 %v262, 3
  %v272 = vpop.permute.xlu0 %271
  %273 = vrot.lane.b32.xlu0 %v263, 3
  %v274 = vpop.permute.xlu0 %273
  %275 = vrot.lane.b32.xlu0 %v264, 3
  %v276 = vpop.permute.xlu0 %275
  %vm277 = vcmask 23552
  %v278 = vsel %vm277, %v270, %v272
  %v279 = vsel %vm277, %v272, %v274
  %v280 = vsel %vm277, %v274, %v276
  %v285 = vadd.f32 %v253, %v270
  %v286 = vadd.f32 %v254, %v278
  %v287 = vadd.f32 %v255, %v279
  %v288 = vadd.f32 %v256, %v280
  %289 = vset.pattern.permute.xlu0 6
  %290 = vperm.xlu0 %289, %v15
  %v291 = vpop.permute.xlu0 %290
  %v293 = vmul.f32 %v291, %v75
  %v294 = vmul.f32 %v291, %v76
  %v295 = vmul.f32 %v291, %v77
  %v296 = vmul.f32 %v291, %v78
  %301 = vrot.lane.b32.xlu0 %v293, 2
  %v302 = vpop.permute.xlu0 %301
  %303 = vrot.lane.b32.xlu0 %v294, 2
  %v304 = vpop.permute.xlu0 %303
  %305 = vrot.lane.b32.xlu0 %v295, 2
  %v306 = vpop.permute.xlu0 %305
  %307 = vrot.lane.b32.xlu0 %v296, 2
  %v308 = vpop.permute.xlu0 %307
  %vm309 = vcmask 15360
  %v310 = vsel %vm309, %v302, %v304
  %v311 = vsel %vm309, %v304, %v306
  %v312 = vsel %vm309, %v306, %v308
  %v317 = vadd.f32 %v285, %v302
  %v318 = vadd.f32 %v286, %v310
  %v319 = vadd.f32 %v287, %v311
  %v320 = vadd.f32 %v288, %v312
  %321 = vset.pattern.permute.xlu0 7
  %322 = vperm.xlu0 %321, %v15
  %v323 = vpop.permute.xlu0 %322
  %v325 = vmul.f32 %v323, %v75
  %v326 = vmul.f32 %v323, %v76
  %v327 = vmul.f32 %v323, %v77
  %v328 = vmul.f32 %v323, %v78
  %333 = vrot.lane.b32.xlu0 %v325, 1
  %v334 = vpop.permute.xlu0 %333
  %335 = vrot.lane.b32.xlu0 %v326, 1
  %v336 = vpop.permute.xlu0 %335
  %337 = vrot.lane.b32.xlu0 %v327, 1
  %v338 = vpop.permute.xlu0 %337
  %339 = vrot.lane.b32.xlu0 %v328, 1
  %v340 = vpop.permute.xlu0 %339
  %vm341 = vcmask 7168
  %v342 = vsel %vm341, %v334, %v336
  %v343 = vsel %vm341, %v336, %v338
  %v344 = vsel %vm341, %v338, %v340
  %v349 = vadd.f32 %v317, %v334
  %v350 = vadd.f32 %v318, %v342
  %v351 = vadd.f32 %v319, %v343
  %v352 = vadd.f32 %v320, %v344
  %353 = vset.pattern.permute.xlu0 9
  %354 = vperm.xlu0 %353, %v15
  %v355 = vpop.permute.xlu0 %354
  %v357 = vmul.f32 %v355, %v75
  %v358 = vmul.f32 %v355, %v76
  %v359 = vmul.f32 %v355, %v77
  %v360 = vmul.f32 %v355, %v78
  %365 = vrot.lane.b32.xlu0 %v357, 127
  %v366 = vpop.permute.xlu0 %365
  %367 = vrot.lane.b32.xlu0 %v358, 127
  %v368 = vpop.permute.xlu0 %367
  %369 = vrot.lane.b32.xlu0 %v359, 127
  %v370 = vpop.permute.xlu0 %369
  %371 = vrot.lane.b32.xlu0 %v360, 127
  %v372 = vpop.permute.xlu0 %371
  %vm373 = vcmask 1039360
  %v374 = vsel %vm373, %v366, %v368
  %v375 = vsel %vm373, %v368, %v370
  %v376 = vsel %vm373, %v370, %v372
  %v381 = vadd.f32 %v349, %v374
  %v382 = vadd.f32 %v350, %v375
  %v383 = vadd.f32 %v351, %v376
  %v384 = vadd.f32 %v352, %v372
  %385 = vset.pattern.permute.xlu0 10
  %386 = vperm.xlu0 %385, %v15
  %v387 = vpop.permute.xlu0 %386
  %v389 = vmul.f32 %v387, %v75
  %v390 = vmul.f32 %v387, %v76
  %v391 = vmul.f32 %v387, %v77
  %v392 = vmul.f32 %v387, %v78
  %397 = vrot.lane.b32.xlu0 %v389, 126
  %v398 = vpop.permute.xlu0 %397
  %399 = vrot.lane.b32.xlu0 %v390, 126
  %v400 = vpop.permute.xlu0 %399
  %401 = vrot.lane.b32.xlu0 %v391, 126
  %v402 = vpop.permute.xlu0 %401
  %403 = vrot.lane.b32.xlu0 %v392, 126
  %v404 = vpop.permute.xlu0 %403
  %vm405 = vcmask 1031168
  %v406 = vsel %vm405, %v398, %v400
  %v407 = vsel %vm405, %v400, %v402
  %v408 = vsel %vm405, %v402, %v404
  %v413 = vadd.f32 %v381, %v406
  %v414 = vadd.f32 %v382, %v407
  %v415 = vadd.f32 %v383, %v408
  %v416 = vadd.f32 %v384, %v404
  %417 = vset.pattern.permute.xlu0 11
  %418 = vperm.xlu0 %417, %v15
  %v419 = vpop.permute.xlu0 %418
  %v421 = vmul.f32 %v419, %v75
  %v422 = vmul.f32 %v419, %v76
  %v423 = vmul.f32 %v419, %v77
  %v424 = vmul.f32 %v419, %v78
  %429 = vrot.lane.b32.xlu0 %v421, 125
  %v430 = vpop.permute.xlu0 %429
  %431 = vrot.lane.b32.xlu0 %v422, 125
  %v432 = vpop.permute.xlu0 %431
  %433 = vrot.lane.b32.xlu0 %v423, 125
  %v434 = vpop.permute.xlu0 %433
  %435 = vrot.lane.b32.xlu0 %v424, 125
  %v436 = vpop.permute.xlu0 %435
  %vm437 = vcmask 1022976
  %v438 = vsel %vm437, %v430, %v432
  %v439 = vsel %vm437, %v432, %v434
  %v440 = vsel %vm437, %v434, %v436
  %v445 = vadd.f32 %v413, %v438
  %v446 = vadd.f32 %v414, %v439
  %v447 = vadd.f32 %v415, %v440
  %v448 = vadd.f32 %v416, %v436
  %449 = vset.pattern.permute.xlu0 12
  %450 = vperm.xlu0 %449, %v15
  %v451 = vpop.permute.xlu0 %450
  %v453 = vmul.f32 %v451, %v75
  %v454 = vmul.f32 %v451, %v76
  %v455 = vmul.f32 %v451, %v77
  %v456 = vmul.f32 %v451, %v78
  %461 = vrot.lane.b32.xlu0 %v453, 107
  %v462 = vpop.permute.xlu0 %461
  %463 = vrot.lane.b32.xlu0 %v454, 107
  %v464 = vpop.permute.xlu0 %463
  %465 = vrot.lane.b32.xlu0 %v455, 107
  %v466 = vpop.permute.xlu0 %465
  %467 = vrot.lane.b32.xlu0 %v456, 107
  %v468 = vpop.permute.xlu0 %467
  %vm469 = vcmask 875520
  %v470 = vsel %vm469, %v462, %v464
  %v471 = vsel %vm469, %v464, %v466
  %v472 = vsel %vm469, %v466, %v468
  %v477 = vadd.f32 %v445, %v470
  %v478 = vadd.f32 %v446, %v471
  %v479 = vadd.f32 %v447, %v472
  %v480 = vadd.f32 %v448, %v468
  %481 = vset.pattern.permute.xlu0 13
  %482 = vperm.xlu0 %481, %v15
  %v483 = vpop.permute.xlu0 %482
  %v485 = vmul.f32 %v483, %v75
  %v486 = vmul.f32 %v483, %v76
  %v487 = vmul.f32 %v483, %v77
  %v488 = vmul.f32 %v483, %v78
  %493 = vrot.lane.b32.xlu0 %v485, 106
  %v494 = vpop.permute.xlu0 %493
  %495 = vrot.lane.b32.xlu0 %v486, 106
  %v496 = vpop.permute.xlu0 %495
  %497 = vrot.lane.b32.xlu0 %v487, 106
  %v498 = vpop.permute.xlu0 %497
  %499 = vrot.lane.b32.xlu0 %v488, 106
  %v500 = vpop.permute.xlu0 %499
  %vm501 = vcmask 867328
  %v502 = vsel %vm501, %v494, %v496
  %v503 = vsel %vm501, %v496, %v498
  %v504 = vsel %vm501, %v498, %v500
  %v509 = vadd.f32 %v477, %v502
  %v510 = vadd.f32 %v478, %v503
  %v511 = vadd.f32 %v479, %v504
  %v512 = vadd.f32 %v480, %v500
  %513 = vset.pattern.permute.xlu0 14
  %514 = vperm.xlu0 %513, %v15
  %v515 = vpop.permute.xlu0 %514
  %v517 = vmul.f32 %v515, %v75
  %v518 = vmul.f32 %v515, %v76
  %v519 = vmul.f32 %v515, %v77
  %v520 = vmul.f32 %v515, %v78
  %525 = vrot.lane.b32.xlu0 %v517, 105
  %v526 = vpop.permute.xlu0 %525
  %527 = vrot.lane.b32.xlu0 %v518, 105
  %v528 = vpop.permute.xlu0 %527
  %529 = vrot.lane.b32.xlu0 %v519, 105
  %v530 = vpop.permute.xlu0 %529
  %531 = vrot.lane.b32.xlu0 %v520, 105
  %v532 = vpop.permute.xlu0 %531
  %vm533 = vcmask 859136
  %v534 = vsel %vm533, %v526, %v528
  %v535 = vsel %vm533, %v528, %v530
  %v536 = vsel %vm533, %v530, %v532
  %v541 = vadd.f32 %v509, %v534
  %v542 = vadd.f32 %v510, %v535
  %v543 = vadd.f32 %v511, %v536
  %v544 = vadd.f32 %v512, %v532
  %545 = vset.pattern.permute.xlu0 15
  %546 = vperm.xlu0 %545, %v15
  %v547 = vpop.permute.xlu0 %546
  %v549 = vmul.f32 %v547, %v75
  %v550 = vmul.f32 %v547, %v76
  %v551 = vmul.f32 %v547, %v77
  %v552 = vmul.f32 %v547, %v78
  %557 = vrot.lane.b32.xlu0 %v549, 84
  %v558 = vpop.permute.xlu0 %557
  %559 = vrot.lane.b32.xlu0 %v550, 84
  %v560 = vpop.permute.xlu0 %559
  %561 = vrot.lane.b32.xlu0 %v551, 84
  %v562 = vpop.permute.xlu0 %561
  %563 = vrot.lane.b32.xlu0 %v552, 84
  %v564 = vpop.permute.xlu0 %563
  %vm565 = vcmask 687104
  %v566 = vsel %vm565, %v558, %v560
  %v567 = vsel %vm565, %v560, %v562
  %v568 = vsel %vm565, %v562, %v564
  %v573 = vadd.f32 %v541, %v566
  %v574 = vadd.f32 %v542, %v567
  %v575 = vadd.f32 %v543, %v568
  %v576 = vadd.f32 %v544, %v564
  %v577 = vld [vmem:[#allocation2 + $0x8] sm:$0xff]
  %v578 = vld [vmem:[#allocation2 + $0x10] sm:$0xff]
  %v579 = vld [vmem:[#allocation2 + $0x18] sm:$0xff]
  %v580 = vld [vmem:[#allocation2 + $0x20] sm:$0xff]
  %581 = vset.pattern.permute.xlu0 16
  %582 = vperm.xlu0 %581, %v15
  %v583 = vpop.permute.xlu0 %582
  %v585 = vmul.f32 %v583, %v577
  %v586 = vmul.f32 %v583, %v578
  %v587 = vmul.f32 %v583, %v579
  %v588 = vmul.f32 %v583, %v580
  %593 = vrot.lane.b32.xlu0 %v585, 62
  %v594 = vpop.permute.xlu0 %593
  %595 = vrot.lane.b32.xlu0 %v586, 62
  %v596 = vpop.permute.xlu0 %595
  %597 = vrot.lane.b32.xlu0 %v587, 62
  %v598 = vpop.permute.xlu0 %597
  %599 = vrot.lane.b32.xlu0 %v588, 62
  %v600 = vpop.permute.xlu0 %599
  %vm601 = vcmask 506880
  %v602 = vsel %vm601, %v594, %v596
  %v603 = vsel %vm601, %v596, %v598
  %v604 = vsel %vm601, %v598, %v600
  %v609 = vadd.f32 %v573, %v594
  %v610 = vadd.f32 %v574, %v602
  %v611 = vadd.f32 %v575, %v603
  %v612 = vadd.f32 %v576, %v604
  %614 = vset.pattern.permute.xlu0 0
  %615 = vperm.xlu0 %614, %v16
  %v616 = vpop.permute.xlu0 %615
  %v618 = vlaneseq
  %v619 = vshrl.u32 %v618, 7
  %v620 = vsub.s32 0, %v619
  %v621 = vrot.slane %v75, %v620
  %v622 = vlaneseq
  %v623 = vshrl.u32 %v622, 7
  %v624 = vsub.s32 0, %v623
  %v625 = vrot.slane %v76, %v624
  %v626 = vlaneseq
  %v627 = vshrl.u32 %v626, 7
  %v628 = vsub.s32 0, %v627
  %v629 = vrot.slane %v77, %v628
  %v630 = vlaneseq
  %v631 = vshrl.u32 %v630, 7
  %v632 = vsub.s32 0, %v631
  %v633 = vrot.slane %v78, %v632
  %v634 = vmul.f32 %v616, %v621
  %v635 = vmul.f32 %v616, %v625
  %v636 = vmul.f32 %v616, %v629
  %v637 = vmul.f32 %v616, %v633
  %v638 = vadd.f32 %v609, %v634
  %v639 = vadd.f32 %v610, %v635
  %v640 = vadd.f32 %v611, %v636
  %v641 = vadd.f32 %v612, %v637
  %642 = vset.pattern.permute.xlu0 1
  %643 = vperm.xlu0 %642, %v16
  %v644 = vpop.permute.xlu0 %643
  %v646 = vlaneseq
  %v647 = vshrl.u32 %v646, 7
  %v648 = vsub.s32 1, %v647
  %v649 = vrot.slane %v75, %v648
  %v650 = vlaneseq
  %v651 = vshrl.u32 %v650, 7
  %v652 = vsub.s32 1, %v651
  %v653 = vrot.slane %v76, %v652
  %v654 = vlaneseq
  %v655 = vshrl.u32 %v654, 7
  %v656 = vsub.s32 1, %v655
  %v657 = vrot.slane %v77, %v656
  %v658 = vlaneseq
  %v659 = vshrl.u32 %v658, 7
  %v660 = vsub.s32 1, %v659
  %v661 = vrot.slane %v78, %v660
  %v662 = vmul.f32 %v644, %v649
  %v663 = vmul.f32 %v644, %v653
  %v664 = vmul.f32 %v644, %v657
  %v665 = vmul.f32 %v644, %v661
  %v666 = vadd.f32 %v638, %v662
  %v667 = vadd.f32 %v639, %v663
  %v668 = vadd.f32 %v640, %v664
  %v669 = vadd.f32 %v641, %v665
  %670 = vset.pattern.permute.xlu0 2
  %671 = vperm.xlu0 %670, %v16
  %v672 = vpop.permute.xlu0 %671
  %v674 = vlaneseq
  %v675 = vshrl.u32 %v674, 7
  %v676 = vsub.s32 2, %v675
  %v677 = vrot.slane %v75, %v676
  %v678 = vlaneseq
  %v679 = vshrl.u32 %v678, 7
  %v680 = vsub.s32 2, %v679
  %v681 = vrot.slane %v76, %v680
  %v682 = vlaneseq
  %v683 = vshrl.u32 %v682, 7
  %v684 = vsub.s32 2, %v683
  %v685 = vrot.slane %v77, %v684
  %v686 = vlaneseq
  %v687 = vshrl.u32 %v686, 7
  %v688 = vsub.s32 2, %v687
  %v689 = vrot.slane %v78, %v688
  %v690 = vmul.f32 %v672, %v677
  %v691 = vmul.f32 %v672, %v681
  %v692 = vmul.f32 %v672, %v685
  %v693 = vmul.f32 %v672, %v689
  %v694 = vadd.f32 %v666, %v690
  %v695 = vadd.f32 %v667, %v691
  %v696 = vadd.f32 %v668, %v692
  %v697 = vadd.f32 %v669, %v693
  %698 = vset.pattern.permute.xlu0 3
  %699 = vperm.xlu0 %698, %v16
  %v700 = vpop.permute.xlu0 %699
  %v702 = vlaneseq
  %v703 = vshrl.u32 %v702, 7
  %v704 = vsub.s32 3, %v703
  %v705 = vrot.slane %v75, %v704
  %v706 = vlaneseq
  %v707 = vshrl.u32 %v706, 7
  %v708 = vsub.s32 3, %v707
  %v709 = vrot.slane %v76, %v708
  %v710 = vlaneseq
  %v711 = vshrl.u32 %v710, 7
  %v712 = vsub.s32 3, %v711
  %v713 = vrot.slane %v77, %v712
  %v714 = vlaneseq
  %v715 = vshrl.u32 %v714, 7
  %v716 = vsub.s32 3, %v715
  %v717 = vrot.slane %v78, %v716
  %v718 = vmul.f32 %v700, %v705
  %v719 = vmul.f32 %v700, %v709
  %v720 = vmul.f32 %v700, %v713
  %v721 = vmul.f32 %v700, %v717
  %v722 = vadd.f32 %v694, %v718
  %v723 = vadd.f32 %v695, %v719
  %v724 = vadd.f32 %v696, %v720
  %v725 = vadd.f32 %v697, %v721
  %726 = vset.pattern.permute.xlu0 4
  %727 = vperm.xlu0 %726, %v16
  %v728 = vpop.permute.xlu0 %727
  %v730 = vlaneseq
  %v731 = vshrl.u32 %v730, 7
  %v732 = vsub.s32 4, %v731
  %v733 = vrot.slane %v75, %v732
  %v734 = vlaneseq
  %v735 = vshrl.u32 %v734, 7
  %v736 = vsub.s32 4, %v735
  %v737 = vrot.slane %v76, %v736
  %v738 = vlaneseq
  %v739 = vshrl.u32 %v738, 7
  %v740 = vsub.s32 4, %v739
  %v741 = vrot.slane %v77, %v740
  %v742 = vlaneseq
  %v743 = vshrl.u32 %v742, 7
  %v744 = vsub.s32 4, %v743
  %v745 = vrot.slane %v78, %v744
  %v746 = vmul.f32 %v728, %v733
  %v747 = vmul.f32 %v728, %v737
  %v748 = vmul.f32 %v728, %v741
  %v749 = vmul.f32 %v728, %v745
  %v750 = vadd.f32 %v722, %v746
  %v751 = vadd.f32 %v723, %v747
  %v752 = vadd.f32 %v724, %v748
  %v753 = vadd.f32 %v725, %v749
  %754 = vset.pattern.permute.xlu0 5
  %755 = vperm.xlu0 %754, %v16
  %v756 = vpop.permute.xlu0 %755
  %v758 = vlaneseq
  %v759 = vshrl.u32 %v758, 7
  %v760 = vsub.s32 5, %v759
  %v761 = vrot.slane %v75, %v760
  %v762 = vlaneseq
  %v763 = vshrl.u32 %v762, 7
  %v764 = vsub.s32 5, %v763
  %v765 = vrot.slane %v76, %v764
  %v766 = vlaneseq
  %v767 = vshrl.u32 %v766, 7
  %v768 = vsub.s32 5, %v767
  %v769 = vrot.slane %v77, %v768
  %v770 = vlaneseq
  %v771 = vshrl.u32 %v770, 7
  %v772 = vsub.s32 5, %v771
  %v773 = vrot.slane %v78, %v772
  %v774 = vmul.f32 %v756, %v761
  %v775 = vmul.f32 %v756, %v765
  %v776 = vmul.f32 %v756, %v769
  %v777 = vmul.f32 %v756, %v773
  %v778 = vadd.f32 %v750, %v774
  %v779 = vadd.f32 %v751, %v775
  %v780 = vadd.f32 %v752, %v776
  %v781 = vadd.f32 %v753, %v777
  %782 = vset.pattern.permute.xlu0 6
  %783 = vperm.xlu0 %782, %v16
  %v784 = vpop.permute.xlu0 %783
  %v786 = vlaneseq
  %v787 = vshrl.u32 %v786, 7
  %v788 = vsub.s32 6, %v787
  %v789 = vrot.slane %v75, %v788
  %v790 = vlaneseq
  %v791 = vshrl.u32 %v790, 7
  %v792 = vsub.s32 6, %v791
  %v793 = vrot.slane %v76, %v792
  %v794 = vlaneseq
  %v795 = vshrl.u32 %v794, 7
  %v796 = vsub.s32 6, %v795
  %v797 = vrot.slane %v77, %v796
  %v798 = vlaneseq
  %v799 = vshrl.u32 %v798, 7
  %v800 = vsub.s32 6, %v799
  %v801 = vrot.slane %v78, %v800
  %v802 = vmul.f32 %v784, %v789
  %v803 = vmul.f32 %v784, %v793
  %v804 = vmul.f32 %v784, %v797
  %v805 = vmul.f32 %v784, %v801
  %v806 = vadd.f32 %v778, %v802
  %v807 = vadd.f32 %v779, %v803
  %v808 = vadd.f32 %v780, %v804
  %v809 = vadd.f32 %v781, %v805
  %810 = vset.pattern.permute.xlu0 7
  %811 = vperm.xlu0 %810, %v16
  %v812 = vpop.permute.xlu0 %811
  %v814 = vlaneseq
  %v815 = vshrl.u32 %v814, 7
  %v816 = vsub.s32 7, %v815
  %v817 = vrot.slane %v75, %v816
  %v818 = vlaneseq
  %v819 = vshrl.u32 %v818, 7
  %v820 = vsub.s32 7, %v819
  %v821 = vrot.slane %v76, %v820
  %v822 = vlaneseq
  %v823 = vshrl.u32 %v822, 7
  %v824 = vsub.s32 7, %v823
  %v825 = vrot.slane %v77, %v824
  %v826 = vlaneseq
  %v827 = vshrl.u32 %v826, 7
  %v828 = vsub.s32 7, %v827
  %v829 = vrot.slane %v78, %v828
  %v830 = vmul.f32 %v812, %v817
  %v831 = vmul.f32 %v812, %v821
  %v832 = vmul.f32 %v812, %v825
  %v833 = vmul.f32 %v812, %v829
  %v834 = vadd.f32 %v806, %v830
  %v835 = vadd.f32 %v807, %v831
  %v836 = vadd.f32 %v808, %v832
  %v837 = vadd.f32 %v809, %v833
  %842 = vrot.lane.b32.xlu0 %v834, 59
  %v843 = vpop.permute.xlu0 %842
  %844 = vrot.lane.b32.xlu0 %v835, 59
  %v845 = vpop.permute.xlu0 %844
  %846 = vrot.lane.b32.xlu0 %v836, 59
  %v847 = vpop.permute.xlu0 %846
  %848 = vrot.lane.b32.xlu0 %v837, 59
  %v849 = vpop.permute.xlu0 %848
  %vm850 = vcmask 482304
  %v851 = vsel %vm850, %v843, %v845
  %v852 = vsel %vm850, %v845, %v847
  %v853 = vsel %vm850, %v847, %v849
  %857 = vst [vmem:[#allocation3] sm:$0xff] %v851
  %858 = vst [vmem:[#allocation3 + $0x8] sm:$0xff] %v852
  %859 = vst [vmem:[#allocation3 + $0x10] sm:$0xff] %v853
  %s860 = smul.u32 0, 24
  %s861 = scalar_lea.vmem %s4, %s860
  %p863 = scmp.lt.u32.totalorder 1, 8
  %p864 = pneg %p863
  // Predicated region
  $region48: #{mfam_pallas.1} parent=0 // pred_check
    _
  $region49: #{mfam_pallas.1} parent=0 // pred_check_branch
    %866 = sbr.rel (%p863) target = $region51
  $region50: #{mfam_pallas.1} parent=0 // pred_region
    %s927 = sand.u32 1, 7
    %p928 = scmp.eq.s32.totalorder %s927, 0
    %p929 = pneg %p928
    // Predicated region
    $region63: #{mfam_pallas.1} parent=50 // pred_check
      _
    $region64: #{mfam_pallas.1} parent=50 // pred_check_branch
      %931 = sbr.rel (%p928) target = $region66
    $region65: #{mfam_pallas.1} parent=50 // pred_region
      %s932 = sand.u32 1, 7
      %s933 = ssub.s32 1, %s932
      %s934 = scalar_lea.vmem [#allocation3], %s933
      %s935 = ssub.s32 1, %s932
      %s936 = scalar_lea.vmem %s861, %s935
      loop: start=0, step=1, limit=1
      $region67: #{mfam_pallas.1} parent=65 // loop_pre_header
        _
      $region68: #{mfam_pallas.1} parent=65 // loop_header
        %s938 = sphi 0, %s942
        %p939 = scmp.ge.s32.totalorder %s938, 1
        %s943 = sphi [#allocation3], [#allocation3]
        %s944 = sphi %s861, %s861
      $region69: #{mfam_pallas.1} parent=65 // loop_header_branch
        %941 = sbr.rel (%p939) target = $region73
      $region70: #{mfam_pallas.1} parent=65 // loop_body
        _
      $region71: #{mfam_pallas.1} parent=65 // loop_footer
        %s942 = sadd.s32 1, %s938
      $region72: #{mfam_pallas.1} parent=65 // loop_footer_branch
        %937 = sbr.rel target = $region68
      $region73: #{mfam_pallas.1} parent=65 // loop_exit
        _
      %s945 = sshllo.u32 0, %s932
      loop: start=0, step=1, limit=1
      $region74: #{mfam_pallas.1} parent=65 // loop_pre_header
        _
      $region75: #{mfam_pallas.1} parent=65 // loop_header
        %s947 = sphi 0, %s951
        %p948 = scmp.ge.s32.totalorder %s947, 1
        %s952 = sphi %s934, %s934
        %s953 = sphi %s936, %s936
      $region76: #{mfam_pallas.1} parent=65 // loop_header_branch
        %950 = sbr.rel (%p948) target = $region80
      $region77: #{mfam_pallas.1} parent=65 // loop_body
        %v954 = vld [vmem:[%s952] sm:%s945]
        %955 = vst [vmem:[%s953] sm:%s945] %v954
        %v956 = vld [vmem:[%s952 + $0x1] sm:%s945]
        %957 = vst [vmem:[%s953 + $0x3] sm:%s945] %v956
        %v958 = vld [vmem:[%s952 + $0x2] sm:%s945]
        %959 = vst [vmem:[%s953 + $0x6] sm:%s945] %v958
        %v960 = vld [vmem:[%s952 + $0x3] sm:%s945]
        %961 = vst [vmem:[%s953 + $0x9] sm:%s945] %v960
        %v962 = vld [vmem:[%s952 + $0x4] sm:%s945]
        %963 = vst [vmem:[%s953 + $0xc] sm:%s945] %v962
        %v964 = vld [vmem:[%s952 + $0x5] sm:%s945]
        %965 = vst [vmem:[%s953 + $0xf] sm:%s945] %v964
        %v966 = vld [vmem:[%s952 + $0x6] sm:%s945]
        %967 = vst [vmem:[%s953 + $0x12] sm:%s945] %v966
        %v968 = vld [vmem:[%s952 + $0x7] sm:%s945]
        %969 = vst [vmem:[%s953 + $0x15] sm:%s945] %v968
        %v970 = vld [vmem:[%s952 + $0x8] sm:%s945]
        %971 = vst [vmem:[%s953 + $0x1] sm:%s945] %v970
        %v972 = vld [vmem:[%s952 + $0x9] sm:%s945]
        %973 = vst [vmem:[%s953 + $0x4] sm:%s945] %v972
        %v974 = vld [vmem:[%s952 + $0xa] sm:%s945]
        %975 = vst [vmem:[%s953 + $0x7] sm:%s945] %v974
        %v976 = vld [vmem:[%s952 + $0xb] sm:%s945]
        %977 = vst [vmem:[%s953 + $0xa] sm:%s945] %v976
        %v978 = vld [vmem:[%s952 + $0xc] sm:%s945]
        %979 = vst [vmem:[%s953 + $0xd] sm:%s945] %v978
        %v980 = vld [vmem:[%s952 + $0xd] sm:%s945]
        %981 = vst [vmem:[%s953 + $0x10] sm:%s945] %v980
        %v982 = vld [vmem:[%s952 + $0xe] sm:%s945]
        %983 = vst [vmem:[%s953 + $0x13] sm:%s945] %v982
        %v984 = vld [vmem:[%s952 + $0xf] sm:%s945]
        %985 = vst [vmem:[%s953 + $0x16] sm:%s945] %v984
        %v986 = vld [vmem:[%s952 + $0x10] sm:%s945]
        %987 = vst [vmem:[%s953 + $0x2] sm:%s945] %v986
        %v988 = vld [vmem:[%s952 + $0x11] sm:%s945]
        %989 = vst [vmem:[%s953 + $0x5] sm:%s945] %v988
        %v990 = vld [vmem:[%s952 + $0x12] sm:%s945]
        %991 = vst [vmem:[%s953 + $0x8] sm:%s945] %v990
        %v992 = vld [vmem:[%s952 + $0x13] sm:%s945]
        %993 = vst [vmem:[%s953 + $0xb] sm:%s945] %v992
        %v994 = vld [vmem:[%s952 + $0x14] sm:%s945]
        %995 = vst [vmem:[%s953 + $0xe] sm:%s945] %v994
        %v996 = vld [vmem:[%s952 + $0x15] sm:%s945]
        %997 = vst [vmem:[%s953 + $0x11] sm:%s945] %v996
        %v998 = vld [vmem:[%s952 + $0x16] sm:%s945]
        %999 = vst [vmem:[%s953 + $0x14] sm:%s945] %v998
        %v1000 = vld [vmem:[%s952 + $0x17] sm:%s945]
        %1001 = vst [vmem:[%s953 + $0x17] sm:%s945] %v1000
      $region78: #{mfam_pallas.1} parent=65 // loop_footer
        %s951 = sadd.s32 1, %s947
      $region79: #{mfam_pallas.1} parent=65 // loop_footer_branch
        %946 = sbr.rel target = $region75
      $region80: #{mfam_pallas.1} parent=65 // loop_exit
        _
    $region66: #{mfam_pallas.1} parent=50 // pred_fallthru
      _
  $region51: #{mfam_pallas.1} parent=0 // pred_fallthru
    _
  // Predicated region
  $region52: #{mfam_pallas.1} parent=0 // pred_check
    %p867 = pneg %p863
  $region53: #{mfam_pallas.1} parent=0 // pred_check_branch
    %869 = sbr.rel (%p867) target = $region55
  $region54: #{mfam_pallas.1} parent=0 // pred_region
    %s870 = sshllo.u32 0, 1
    loop: start=0, step=1, limit=1
    $region56: #{mfam_pallas.1} parent=54 // loop_pre_header
      _
    $region57: #{mfam_pallas.1} parent=54 // loop_header
      %s872 = sphi 0, %s876
      %p873 = scmp.ge.s32.totalorder %s872, 1
      %s877 = sphi [#allocation3], [#allocation3]
      %s878 = sphi %s861, %s861
    $region58: #{mfam_pallas.1} parent=54 // loop_header_branch
      %875 = sbr.rel (%p873) target = $region62
    $region59: #{mfam_pallas.1} parent=54 // loop_body
      %v879 = vld [vmem:[%s877] sm:%s870]
      %880 = vst [vmem:[%s878] sm:%s870] %v879
      %v881 = vld [vmem:[%s877 + $0x1] sm:%s870]
      %882 = vst [vmem:[%s878 + $0x3] sm:%s870] %v881
      %v883 = vld [vmem:[%s877 + $0x2] sm:%s870]
      %884 = vst [vmem:[%s878 + $0x6] sm:%s870] %v883
      %v885 = vld [vmem:[%s877 + $0x3] sm:%s870]
      %886 = vst [vmem:[%s878 + $0x9] sm:%s870] %v885
      %v887 = vld [vmem:[%s877 + $0x4] sm:%s870]
      %888 = vst [vmem:[%s878 + $0xc] sm:%s870] %v887
      %v889 = vld [vmem:[%s877 + $0x5] sm:%s870]
      %890 = vst [vmem:[%s878 + $0xf] sm:%s870] %v889
      %v891 = vld [vmem:[%s877 + $0x6] sm:%s870]
      %892 = vst [vmem:[%s878 + $0x12] sm:%s870] %v891
      %v893 = vld [vmem:[%s877 + $0x7] sm:%s870]
      %894 = vst [vmem:[%s878 + $0x15] sm:%s870] %v893
      %v895 = vld [vmem:[%s877 + $0x8] sm:%s870]
      %896 = vst [vmem:[%s878 + $0x1] sm:%s870] %v895
      %v897 = vld [vmem:[%s877 + $0x9] sm:%s870]
      %898 = vst [vmem:[%s878 + $0x4] sm:%s870] %v897
      %v899 = vld [vmem:[%s877 + $0xa] sm:%s870]
      %900 = vst [vmem:[%s878 + $0x7] sm:%s870] %v899
      %v901 = vld [vmem:[%s877 + $0xb] sm:%s870]
      %902 = vst [vmem:[%s878 + $0xa] sm:%s870] %v901
      %v903 = vld [vmem:[%s877 + $0xc] sm:%s870]
      %904 = vst [vmem:[%s878 + $0xd] sm:%s870] %v903
      %v905 = vld [vmem:[%s877 + $0xd] sm:%s870]
      %906 = vst [vmem:[%s878 + $0x10] sm:%s870] %v905
      %v907 = vld [vmem:[%s877 + $0xe] sm:%s870]
      %908 = vst [vmem:[%s878 + $0x13] sm:%s870] %v907
      %v909 = vld [vmem:[%s877 + $0xf] sm:%s870]
      %910 = vst [vmem:[%s878 + $0x16] sm:%s870] %v909
      %v911 = vld [vmem:[%s877 + $0x10] sm:%s870]
      %912 = vst [vmem:[%s878 + $0x2] sm:%s870] %v911
      %v913 = vld [vmem:[%s877 + $0x11] sm:%s870]
      %914 = vst [vmem:[%s878 + $0x5] sm:%s870] %v913
      %v915 = vld [vmem:[%s877 + $0x12] sm:%s870]
      %916 = vst [vmem:[%s878 + $0x8] sm:%s870] %v915
      %v917 = vld [vmem:[%s877 + $0x13] sm:%s870]
      %918 = vst [vmem:[%s878 + $0xb] sm:%s870] %v917
      %v919 = vld [vmem:[%s877 + $0x14] sm:%s870]
      %920 = vst [vmem:[%s878 + $0xe] sm:%s870] %v919
      %v921 = vld [vmem:[%s877 + $0x15] sm:%s870]
      %922 = vst [vmem:[%s878 + $0x11] sm:%s870] %v921
      %v923 = vld [vmem:[%s877 + $0x16] sm:%s870]
      %924 = vst [vmem:[%s878 + $0x14] sm:%s870] %v923
      %v925 = vld [vmem:[%s877 + $0x17] sm:%s870]
      %926 = vst [vmem:[%s878 + $0x17] sm:%s870] %v925
    $region60: #{mfam_pallas.1} parent=54 // loop_footer
      %s876 = sadd.s32 1, %s872
    $region61: #{mfam_pallas.1} parent=54 // loop_footer_branch
      %871 = sbr.rel target = $region57
    $region62: #{mfam_pallas.1} parent=54 // loop_exit
      _
  $region55: #{mfam_pallas.1} parent=0 // pred_fallthru
    _
  // Predicated region
  $region81: #{mfam_pallas.1} parent=0 // pred_check
    _
  $region82: #{mfam_pallas.1} parent=0 // pred_check_branch
    %1004 = sbr.rel (0) target = $region84
  $region83: #{mfam_pallas.1} parent=0 // pred_region
    %1005 = vsyncadd [#allocation5], 384
  $region84: #{mfam_pallas.1} parent=0 // pred_fallthru
    _
  %s1006 = smul.u32 8, 3
  %s1007 = sshll.u32 %s1006, 4
  %1008 = dma.done [#allocation5], %s1007
  %1009 = vsyncmov [#allocation4]
  %s1010 = vpop.sfrf %1009
  %p1011 = scmp.eq.s32.totalorder %s1010, 0
  %p1012 = pneg %p1011
  %1014 = shalt.err (%p1012)
  %s1015 = scalar_lea.sflag [#allocation4], 1
  %1016 = vsyncmov %s1015
  %s1017 = vpop.sfrf %1016
  %p1018 = scmp.eq.s32.totalorder %s1017, 0
  %p1019 = pneg %p1018
  %1021 = shalt.err (%p1019)
  %1022 = vsyncmov [#allocation5]
  %s1023 = vpop.sfrf %1022
  %p1024 = scmp.eq.s32.totalorder %s1023, 0
  %p1025 = pneg %p1024
  %1027 = shalt.err (%p1025)
  %s1028 = scalar_lea.sflag [#allocation5], 1
  %1029 = vsyncmov %s1028
  %s1030 = vpop.sfrf %1029
  %p1031 = scmp.eq.s32.totalorder %s1030, 0
  %p1032 = pneg %p1031
  %1034 = shalt.err (%p1032)

</llo_original>
